<compile_context>
chip_gen: v5e
topology: v5e:2x2
jax: 0.10.0
libtpu: 0.0.40
codegen_flags: <defaults>
</compile_context>

<pallas_src>
import math

import jax
import jax.numpy as jnp
import numpy as np
from jax.experimental import pallas as pl
from jax.experimental.pallas import tpu as pltpu

NEG_INF = -1e9
SUBLANE = 8


# --------------------------------------------------------------------------
# Kernel: one grid step == one (batch tile, kept layer) pair.
# lang_out_ref / visn_out_ref act as VMEM-resident state across the layer axis.
# --------------------------------------------------------------------------
def _cross_stack_kernel(kept_ref,                     # SMEM [n_kept] int32 (used only by index_maps)
                        lang_in_ref, visn_in_ref,     # [Bt, Ll, D], [Bt, Lv, D] f32
                        lang_mask_ref, visn_mask_ref, # [Bt, 1, Ll], [Bt, 1, Lv] f32 additive
                        wqkv_l_ref, wqkv_v_ref,       # [D, 3D] bf16 (layer dim squeezed, scale folded into Q)
                        wo_l_ref, wo_v_ref,           # [D, D]  bf16
                        lang_out_ref, visn_out_ref):  # [Bt, Ll, D], [Bt, Lv, D] f32
    del kept_ref
    bf16 = jnp.bfloat16
    f32 = jnp.float32

    layer_step = pl.program_id(1)

    # First kept layer for this batch tile: seed the resident activations.
    @pl.when(layer_step == 0)
    def _init():
        lang_out_ref[...] = lang_in_ref[...]
        visn_out_ref[...] = visn_in_ref[...]

    lang = lang_out_ref[...]                     # f32 residents
    visn = visn_out_ref[...]
    bt, ll, d = lang.shape
    lv = visn.shape[1]

    # Fused QKV projections (one [M, D] x [D, 3D] matmul per stream, bf16 -> f32
    # acc), then a single cast to bf16: q/k/v are consumed as bf16 anyway and
    # this halves the largest in-kernel intermediate.
    lang_qkv = jnp.dot(lang.reshape(bt * ll, d).astype(bf16), wqkv_l_ref[...],
                       preferred_element_type=f32).astype(bf16).reshape(bt, ll, 3 * d)
    visn_qkv = jnp.dot(visn.reshape(bt * lv, d).astype(bf16), wqkv_v_ref[...],
                       preferred_element_type=f32).astype(bf16).reshape(bt, lv, 3 * d)

    q_l = lang_qkv[..., 0 * d:1 * d]
    k_l = lang_qkv[..., 1 * d:2 * d]
    v_l = lang_qkv[..., 2 * d:3 * d]
    q_v = visn_qkv[..., 0 * d:1 * d]
    k_v = visn_qkv[..., 1 * d:2 * d]
    v_v = visn_qkv[..., 2 * d:3 * d]

    def _attend(q, k, v, mask, wo):
        # 1/sqrt(D) is already folded into the Q columns of Wqkv (host side),
        # so no per-element scale multiply here.  Contract over D directly
        # (no explicit K transpose); bf16 operands, f32 accumulation.
        s = jnp.einsum('bqd,bkd->bqk', q, k, preferred_element_type=f32)
        s = s + mask                              # additive mask, f32 (padding baked in)
        m = jnp.max(s, axis=-1, keepdims=True)    # softmax fully in f32
        p = jnp.exp(s - m)
        denom = jnp.sum(p, axis=-1, keepdims=True)
        p = p * pl.reciprocal(denom, approx=True)
        ctx = jnp.einsum('bqk,bkd->bqd', p.astype(bf16), v,
                         preferred_element_type=f32)
        bq = ctx.shape[0] * ctx.shape[1]
        return jnp.dot(ctx.reshape(bq, d).astype(bf16), wo,
                       preferred_element_type=f32).reshape(ctx.shape)

    lang_new = lang + _attend(q_l, k_v, v_v, visn_mask_ref[...], wo_l_ref[...])
    visn_new = visn + _attend(q_v, k_l, v_l, lang_mask_ref[...], wo_v_ref[...])

    # Single store per stream per layer step (residents carried to next step;
    # HBM writeback happens only when the batch-tile block index changes / grid ends).
    lang_out_ref[...] = lang_new
    visn_out_ref[...] = visn_new


# --------------------------------------------------------------------------
# Host-side helpers
# --------------------------------------------------------------------------
def _round_up(x, m):
    return ((x + m - 1) // m) * m


def _fold_scale_into_q(w_qkv, d, scale):
    """Fold 1/sqrt(D) into the Q columns of a fused [..., D, 3D] QKV weight."""
    w = w_qkv.astype(jnp.float32)
    w_q = w[..., :d] * scale
    return jnp.concatenate([w_q, w[..., d:]], axis=-1).astype(jnp.bfloat16)


def _pick_vmem_limit():
    """Generation-aware VMEM limit: ~96 MiB on 128-MiB chips (v5e/v6e), 48 MiB otherwise (v7x)."""
    try:
        cap = pltpu.get_tpu_info().vmem_capacity_bytes
    except Exception:
        cap = 64 * 1024 * 1024
    if cap >= 128 * 1024 * 1024:
        return 96 * 1024 * 1024
    return 48 * 1024 * 1024


def _est_vmem_bytes(bt, ll_p, lv_p, d):
    """Rough per-step VMEM footprint for a given batch tile."""
    feat = bt * (ll_p + lv_p) * d * 4                 # one f32 activation pair
    mask = bt * (ll_p + lv_p) * 4
    w = (2 * d * 3 * d + 2 * d * d) * 2               # bf16 weights per layer
    blocks = 2 * feat + 2 * feat + 2 * mask + 2 * w   # in + out + masks + weights (double-buffered)
    inter = bt * (ll_p + lv_p) * 3 * d * 2            # bf16 fused qkv
    inter += 2 * bt * ll_p * lv_p * 4                 # f32 scores + probs
    inter += feat                                     # ctx / residual temporaries
    return blocks + inter


def _pick_batch_tile(B, ll_p, lv_p, d, vmem_limit_bytes):
    # At least 2 batch tiles whenever B >= 2 (v7x has 2 TensorCores and the
    # "parallel" batch axis is the only thing sharded across them); tile capped
    # at 16 to amortize grid-step overhead on v5e/v6e, then shrunk to fit the
    # VMEM budget with headroom for pipelining.
    if B <= 1:
        tile = 1
    else:
        tile = min(16, max(1, B // 2))
    budget = int(0.6 * vmem_limit_bytes)
    while tile > 1 and _est_vmem_bytes(tile, ll_p, lv_p, d) > budget:
        tile //= 2
    return tile


# --------------------------------------------------------------------------
# Host-side driver
# --------------------------------------------------------------------------
def layerdrop_cross_forward(lang_feats, lang_mask, visn_feats, visn_mask,
                            w_qkv_lang, w_qkv_visn, w_o_lang, w_o_visn,
                            kept_ids, *, batch_tile=None, interpret=False):
    """Apply the kept cross-modal layers (compacted index list) in one kernel."""
    B, L_lang, D = lang_feats.shape
    _, L_visn, _ = visn_feats.shape
    n_kept = int(kept_ids.shape[0])
    if n_kept == 0:                               # every layer dropped
        return lang_feats, visn_feats

    scale = 1.0 / math.sqrt(D)
    w_qkv_lang = _fold_scale_into_q(w_qkv_lang, D, scale)
    w_qkv_visn = _fold_scale_into_q(w_qkv_visn, D, scale)
    w_o_lang = w_o_lang.astype(jnp.bfloat16)
    w_o_visn = w_o_visn.astype(jnp.bfloat16)

    # Pad sequence (key/query) dims to SUBLANE (8) multiples only: D=128 is the
    # lane-dense last dim, so padding L to 128 would only add wasted M rows.
    # Padding is baked into the additive masks as NEG_INF keys.
    Ll_p = _round_up(L_lang, SUBLANE)
    Lv_p = _round_up(L_visn, SUBLANE)

    vmem_limit = _pick_vmem_limit()
    if batch_tile is None:
        batch_tile = _pick_batch_tile(B, Ll_p, Lv_p, D, vmem_limit)
    B_p = _round_up(B, batch_tile)

    def pad_feat(x, Lp):
        return jnp.pad(x.astype(jnp.float32),
                       ((0, B_p - B), (0, Lp - x.shape[1]), (0, 0)))

    def pad_mask(m, Lp):
        return jnp.pad(m.astype(jnp.float32),
                       ((0, B_p - B), (0, 0), (0, Lp - m.shape[-1])),
                       constant_values=NEG_INF)

    lang_p = pad_feat(lang_feats, Ll_p)
    visn_p = pad_feat(visn_feats, Lv_p)
    lmask_p = pad_mask(lang_mask, Ll_p)
    vmask_p = pad_mask(visn_mask, Lv_p)

    grid = (B_p // batch_tile, n_kept)

    lang_spec = pl.BlockSpec((batch_tile, Ll_p, D), lambda b, l, kept: (b, 0, 0))
    visn_spec = pl.BlockSpec((batch_tile, Lv_p, D), lambda b, l, kept: (b, 0, 0))
    lmask_spec = pl.BlockSpec((batch_tile, 1, Ll_p), lambda b, l, kept: (b, 0, 0))
    vmask_spec = pl.BlockSpec((batch_tile, 1, Lv_p), lambda b, l, kept: (b, 0, 0))
    # Data-dependent layer index via scalar prefetch: only kept layers are ever DMA'd.
    wqkv_spec = pl.BlockSpec((None, D, 3 * D), lambda b, l, kept: (kept[l], 0, 0))
    wo_spec = pl.BlockSpec((None, D, D), lambda b, l, kept: (kept[l], 0, 0))

    grid_spec = pltpu.PrefetchScalarGridSpec(
        num_scalar_prefetch=1,
        grid=grid,
        in_specs=[lang_spec, visn_spec, lmask_spec, vmask_spec,
                  wqkv_spec, wqkv_spec, wo_spec, wo_spec],
        out_specs=[lang_spec, visn_spec],
    )

    out_shapes = (jax.ShapeDtypeStruct((B_p, Ll_p, D), jnp.float32),
                  jax.ShapeDtypeStruct((B_p, Lv_p, D), jnp.float32))

    lang_out, visn_out = pl.pallas_call(
        _cross_stack_kernel,
        grid_spec=grid_spec,
        out_shape=out_shapes,
        compiler_params=pltpu.CompilerParams(
            dimension_semantics=("parallel", "arbitrary"),
            vmem_limit_bytes=vmem_limit,
        ),
        interpret=interpret,
    )(kept_ids.astype(jnp.int32),
      lang_p, visn_p, lmask_p, vmask_p,
      w_qkv_lang, w_qkv_visn, w_o_lang, w_o_visn)

    return lang_out[:B, :L_lang, :], visn_out[:B, :L_visn, :]


# --------------------------------------------------------------------------
# Pure-JAX reference (mimics the kernel's bf16 matmul / f32 softmax numerics,
# including the scale fold into the Q columns of Wqkv)
# --------------------------------------------------------------------------
def _cross_layer_ref(lang, visn, lang_mask, visn_mask,
                     wqkv_l, wqkv_v, wo_l, wo_v, scale):
    bf16, f32 = jnp.bfloat16, jnp.float32
    D = lang.shape[-1]
    wqkv_l = _fold_scale_into_q(wqkv_l, D, scale)
    wqkv_v = _fold_scale_into_q(wqkv_v, D, scale)
    wo_l = wo_l.astype(bf16)
    wo_v = wo_v.astype(bf16)

    lang_qkv = jnp.einsum('bld,de->ble', lang.astype(bf16), wqkv_l,
                          preferred_element_type=f32).astype(bf16)
    visn_qkv = jnp.einsum('bld,de->ble', visn.astype(bf16), wqkv_v,
                          preferred_element_type=f32).astype(bf16)
    q_l, k_l, v_l = lang_qkv[..., :D], lang_qkv[..., D:2 * D], lang_qkv[..., 2 * D:]
    q_v, k_v, v_v = visn_qkv[..., :D], visn_qkv[..., D:2 * D], visn_qkv[..., 2 * D:]

    def attend(q, k, v, mask, wo):
        s = jnp.einsum('bqd,bkd->bqk', q, k, preferred_element_type=f32)
        s = s + mask
        p = jax.nn.softmax(s, axis=-1)
        ctx = jnp.einsum('bqk,bkd->bqd', p.astype(bf16), v,
                         preferred_element_type=f32)
        return jnp.einsum('bqd,de->bqe', ctx.astype(bf16), wo,
                          preferred_element_type=f32)

    lang_new = lang + attend(q_l, k_v, v_v, visn_mask, wo_l)
    visn_new = visn + attend(q_v, k_l, v_l, lang_mask, wo_v)
    return lang_new, visn_new


# --------------------------------------------------------------------------
# Demo / self-check
# --------------------------------------------------------------------------
if __name__ == "__main__":
    B, L_LANG, L_VISN, D = 2, 24, 40, 128
    N_LAYERS, LAYERS_TO_DROP = 4, 2

    key = jax.random.PRNGKey(0)
    keys = jax.random.split(key, 8)

    lang = jax.random.normal(keys[0], (B, L_LANG, D), jnp.float32)
    visn = jax.random.normal(keys[1], (B, L_VISN, D), jnp.float32)

    # Additive attention masks (0 = keep, -1e9 = masked key), per-example valid lengths.
    lang_valid = jnp.maximum(L_LANG - 5 * jnp.arange(B), 1)
    visn_valid = jnp.maximum(L_VISN - 7 * jnp.arange(B), 1)
    lang_mask = jnp.where(jnp.arange(L_LANG)[None, :] < lang_valid[:, None],
                          0.0, NEG_INF)[:, None, :].astype(jnp.float32)
    visn_mask = jnp.where(jnp.arange(L_VISN)[None, :] < visn_valid[:, None],
                          0.0, NEG_INF)[:, None, :].astype(jnp.float32)

    # Per-layer weights: fused QKV per stream ([D, 3D]) + output proj ([D, D]), bf16 in HBM.
    w_scale = 1.0 / math.sqrt(D)
    w_qkv_lang = (jax.random.normal(keys[2], (N_LAYERS, D, 3 * D)) * w_scale).astype(jnp.bfloat16)
    w_qkv_visn = (jax.random.normal(keys[3], (N_LAYERS, D, 3 * D)) * w_scale).astype(jnp.bfloat16)
    w_o_lang = (jax.random.normal(keys[4], (N_LAYERS, D, D)) * w_scale).astype(jnp.bfloat16)
    w_o_visn = (jax.random.normal(keys[5], (N_LAYERS, D, D)) * w_scale).astype(jnp.bfloat16)

    # torch.randint semantics: sample drop indices WITH replacement, then keep
    # every layer index not in the sampled set.  The compacted kept list is
    # built host-side because its length defines the (static) layer grid extent.
    drop = jax.random.randint(keys[6], (LAYERS_TO_DROP,), 0, N_LAYERS)
    drop_set = set(np.asarray(drop).tolist())
    kept_np = np.array([i for i in range(N_LAYERS) if i not in drop_set], dtype=np.int32)
    kept_ids = jnp.asarray(kept_np)

    lang_out, visn_out = layerdrop_cross_forward(
        lang, lang_mask, visn, visn_mask,
        w_qkv_lang, w_qkv_visn, w_o_lang, w_o_visn, kept_ids)
    (lang_out, visn_out) = jax.block_until_ready((lang_out, visn_out))

    # Reference: apply the same kept layers sequentially in pure JAX.
    lang_ref, visn_ref = lang, visn
    scale = 1.0 / math.sqrt(D)
    for li in kept_np.tolist():
        lang_ref, visn_ref = _cross_layer_ref(
            lang_ref, visn_ref, lang_mask, visn_mask,
            w_qkv_lang[li], w_qkv_visn[li], w_o_lang[li], w_o_visn[li], scale)

    err_l = float(jnp.max(jnp.abs(lang_out - lang_ref)))
    err_v = float(jnp.max(jnp.abs(visn_out - visn_ref)))
    if not (np.isfinite(err_l) and np.isfinite(err_v) and err_l < 5e-2 and err_v < 5e-2):
        raise SystemExit(f"numerical mismatch: lang err={err_l:.3e}, visn err={err_v:.3e}")

    print("KERNEL_OK")
</pallas_src>

<mosaic_0001>
module attributes {stable_mosaic.version = 11 : i64} {
  func.func @_cross_stack_kernel(%arg0: i32, %arg1: i32, %arg2: memref<2xi32, #tpu.memory_space<smem>>, %arg3: memref<1x24x128xf32, #tpu.memory_space<vmem>>, %arg4: memref<1x40x128xf32, #tpu.memory_space<vmem>>, %arg5: memref<1x1x24xf32, #tpu.memory_space<vmem>>, %arg6: memref<1x1x40xf32, #tpu.memory_space<vmem>>, %arg7: memref<1x128x384xbf16, #tpu.memory_space<vmem>>, %arg8: memref<1x128x384xbf16, #tpu.memory_space<vmem>>, %arg9: memref<1x128x128xbf16, #tpu.memory_space<vmem>>, %arg10: memref<1x128x128xbf16, #tpu.memory_space<vmem>>, %arg11: memref<1x24x128xf32, #tpu.memory_space<vmem>>, %arg12: memref<1x40x128xf32, #tpu.memory_space<vmem>>) attributes {dimension_semantics = [#tpu.dimension_semantics<parallel>, #tpu.dimension_semantics<arbitrary>], iteration_bounds = array<i64: 2, 2>, scalar_prefetch = 1 : i64, scratch_operands = 0 : i64, tpu.core_type = #tpu.core_type<tc>, window_params = [{transform_indices = @transform_0, window_bounds = array<i64: 1, 24, 128>}, {transform_indices = @transform_1, window_bounds = array<i64: 1, 40, 128>}, {transform_indices = @transform_2, window_bounds = array<i64: 1, 1, 24>}, {transform_indices = @transform_3, window_bounds = array<i64: 1, 1, 40>}, {transform_indices = @transform_4, window_bounds = array<i64: 1, 128, 384>}, {transform_indices = @transform_5, window_bounds = array<i64: 1, 128, 384>}, {transform_indices = @transform_6, window_bounds = array<i64: 1, 128, 128>}, {transform_indices = @transform_7, window_bounds = array<i64: 1, 128, 128>}, {transform_indices = @transform_8, window_bounds = array<i64: 1, 24, 128>}, {transform_indices = @transform_9, window_bounds = array<i64: 1, 40, 128>}]} {
    %c0_i32 = arith.constant 0 : i32
    %0 = arith.cmpi eq, %arg1, %c0_i32 : i32
    %1 = arith.extui %0 : i1 to i32
    %c0_i32_0 = arith.constant 0 : i32
    %2 = arith.cmpi ne, %1, %c0_i32_0 : i32
    scf.if %2 {
      %c0_41 = arith.constant 0 : index
      %c0_42 = arith.constant 0 : index
      %c0_43 = arith.constant 0 : index
      %73 = vector.load %arg3[%c0_41, %c0_42, %c0_43] : memref<1x24x128xf32, #tpu.memory_space<vmem>>, vector<1x24x128xf32>
      %c0_44 = arith.constant 0 : index
      %c0_45 = arith.constant 0 : index
      %c0_46 = arith.constant 0 : index
      %74 = vector.load %arg11[%c0_44, %c0_45, %c0_46] : memref<1x24x128xf32, #tpu.memory_space<vmem>>, vector<1x24x128xf32>
      tpu.vector_store %arg11[%c0_44, %c0_45, %c0_46], %73 {strides = array<i32>} : memref<1x24x128xf32, #tpu.memory_space<vmem>>, vector<1x24x128xf32>,
      %c0_47 = arith.constant 0 : index
      %c0_48 = arith.constant 0 : index
      %c0_49 = arith.constant 0 : index
      %75 = vector.load %arg4[%c0_47, %c0_48, %c0_49] : memref<1x40x128xf32, #tpu.memory_space<vmem>>, vector<1x40x128xf32>
      %c0_50 = arith.constant 0 : index
      %c0_51 = arith.constant 0 : index
      %c0_52 = arith.constant 0 : index
      %76 = vector.load %arg12[%c0_50, %c0_51, %c0_52] : memref<1x40x128xf32, #tpu.memory_space<vmem>>, vector<1x40x128xf32>
      tpu.vector_store %arg12[%c0_50, %c0_51, %c0_52], %75 {strides = array<i32>} : memref<1x40x128xf32, #tpu.memory_space<vmem>>, vector<1x40x128xf32>,
    } else {
    }
    %c0 = arith.constant 0 : index
    %c0_1 = arith.constant 0 : index
    %c0_2 = arith.constant 0 : index
    %3 = vector.load %arg11[%c0, %c0_1, %c0_2] : memref<1x24x128xf32, #tpu.memory_space<vmem>>, vector<1x24x128xf32>
    %c0_3 = arith.constant 0 : index
    %c0_4 = arith.constant 0 : index
    %c0_5 = arith.constant 0 : index
    %4 = vector.load %arg12[%c0_3, %c0_4, %c0_5] : memref<1x40x128xf32, #tpu.memory_space<vmem>>, vector<1x40x128xf32>
    %5 = vector.shape_cast %3 : vector<1x24x128xf32> to vector<24x128xf32>
    %6 = arith.truncf %5 : vector<24x128xf32> to vector<24x128xbf16>
    %c0_6 = arith.constant 0 : index
    %c0_7 = arith.constant 0 : index
    %c0_8 = arith.constant 0 : index
    %7 = vector.load %arg7[%c0_6, %c0_7, %c0_8] : memref<1x128x384xbf16, #tpu.memory_space<vmem>>, vector<1x128x384xbf16>
    %8 = vector.shape_cast %7 : vector<1x128x384xbf16> to vector<128x384xbf16>
    %cst = arith.constant dense<0.000000e+00> : vector<24x384xf32>
    %9 = tpu.matmul %6, %8, %cst {dimension_numbers = #tpu.dot_dimension_numbers<[1], [0], [0], [1], [0, 0, 1, 1], [], []>} : vector<24x128xbf16>, vector<128x384xbf16>, vector<24x384xf32> -> vector<24x384xf32>
    %10 = arith.truncf %9 : vector<24x384xf32> to vector<24x384xbf16>
    %11 = vector.shape_cast %10 : vector<24x384xbf16> to vector<1x24x384xbf16>
    %12 = vector.shape_cast %4 : vector<1x40x128xf32> to vector<40x128xf32>
    %13 = arith.truncf %12 : vector<40x128xf32> to vector<40x128xbf16>
    %c0_9 = arith.constant 0 : index
    %c0_10 = arith.constant 0 : index
    %c0_11 = arith.constant 0 : index
    %14 = vector.load %arg8[%c0_9, %c0_10, %c0_11] : memref<1x128x384xbf16, #tpu.memory_space<vmem>>, vector<1x128x384xbf16>
    %15 = vector.shape_cast %14 : vector<1x128x384xbf16> to vector<128x384xbf16>
    %cst_12 = arith.constant dense<0.000000e+00> : vector<40x384xf32>
    %16 = tpu.matmul %13, %15, %cst_12 {dimension_numbers = #tpu.dot_dimension_numbers<[1], [0], [0], [1], [0, 0, 1, 1], [], []>} : vector<40x128xbf16>, vector<128x384xbf16>, vector<40x384xf32> -> vector<40x384xf32>
    %17 = arith.truncf %16 : vector<40x384xf32> to vector<40x384xbf16>
    %18 = vector.shape_cast %17 : vector<40x384xbf16> to vector<1x40x384xbf16>
    %19 = vector.extract_strided_slice %11 {offsets = [0, 0, 0], sizes = [1, 24, 128], strides = [1, 1, 1]} : vector<1x24x384xbf16> to vector<1x24x128xbf16>
    %20 = vector.extract_strided_slice %11 {offsets = [0, 0, 128], sizes = [1, 24, 128], strides = [1, 1, 1]} : vector<1x24x384xbf16> to vector<1x24x128xbf16>
    %21 = vector.extract_strided_slice %11 {offsets = [0, 0, 256], sizes = [1, 24, 128], strides = [1, 1, 1]} : vector<1x24x384xbf16> to vector<1x24x128xbf16>
    %22 = vector.extract_strided_slice %18 {offsets = [0, 0, 0], sizes = [1, 40, 128], strides = [1, 1, 1]} : vector<1x40x384xbf16> to vector<1x40x128xbf16>
    %23 = vector.extract_strided_slice %18 {offsets = [0, 0, 128], sizes = [1, 40, 128], strides = [1, 1, 1]} : vector<1x40x384xbf16> to vector<1x40x128xbf16>
    %24 = vector.extract_strided_slice %18 {offsets = [0, 0, 256], sizes = [1, 40, 128], strides = [1, 1, 1]} : vector<1x40x384xbf16> to vector<1x40x128xbf16>
    %c0_13 = arith.constant 0 : index
    %c0_14 = arith.constant 0 : index
    %c0_15 = arith.constant 0 : index
    %25 = vector.load %arg6[%c0_13, %c0_14, %c0_15] : memref<1x1x40xf32, #tpu.memory_space<vmem>>, vector<1x1x40xf32>
    %c0_16 = arith.constant 0 : index
    %c0_17 = arith.constant 0 : index
    %c0_18 = arith.constant 0 : index
    %26 = vector.load %arg9[%c0_16, %c0_17, %c0_18] : memref<1x128x128xbf16, #tpu.memory_space<vmem>>, vector<1x128x128xbf16>
    %27 = vector.shape_cast %26 : vector<1x128x128xbf16> to vector<128x128xbf16>
    "tpu.trace_start"() <{level = 10 : i32, message = "bqd,bkd->bqk"}> : () -> ()
    %cst_19 = arith.constant dense<0.000000e+00> : vector<1x24x40xf32>
    %28 = tpu.matmul %19, %23, %cst_19 {dimension_numbers = #tpu.dot_dimension_numbers<[2], [2], [1], [1], [0, 0, 0, 1, 1, 1], [0], [0]>} : vector<1x24x128xbf16>, vector<1x40x128xbf16>, vector<1x24x40xf32> -> vector<1x24x40xf32>
    "tpu.trace_stop"() : () -> ()
    %29 = vector.broadcast %25 : vector<1x1x40xf32> to vector<1x24x40xf32>
    %30 = arith.addf %28, %29 : vector<1x24x40xf32>
    %cst_20 = arith.constant dense<0xFF800000> : vector<1x24xf32>
    %31 = vector.multi_reduction <maximumf>, %30, %cst_20 [2] : vector<1x24x40xf32> to vector<1x24xf32>
    %32 = vector.shape_cast %31 : vector<1x24xf32> to vector<1x24x1xf32>
    %33 = vector.broadcast %32 : vector<1x24x1xf32> to vector<1x24x40xf32>
    %34 = arith.subf %30, %33 : vector<1x24x40xf32>
    %35 = math.exp %34 : vector<1x24x40xf32>
    %cst_21 = arith.constant dense<0.000000e+00> : vector<1x24xf32>
    %36 = vector.multi_reduction <add>, %35, %cst_21 [2] : vector<1x24x40xf32> to vector<1x24xf32>
    %37 = vector.shape_cast %36 : vector<1x24xf32> to vector<1x24x1xf32>
    %38 = tpu.reciprocal %37 {approx = true} : vector<1x24x1xf32> -> vector<1x24x1xf32>
    %39 = vector.broadcast %38 : vector<1x24x1xf32> to vector<1x24x40xf32>
    %40 = arith.mulf %35, %39 : vector<1x24x40xf32>
    %41 = arith.truncf %40 : vector<1x24x40xf32> to vector<1x24x40xbf16>
    "tpu.trace_start"() <{level = 10 : i32, message = "bqk,bkd->bqd"}> : () -> ()
    %cst_22 = arith.constant dense<0.000000e+00> : vector<1x24x128xf32>
    %42 = tpu.matmul %41, %24, %cst_22 {dimension_numbers = #tpu.dot_dimension_numbers<[2], [1], [1], [2], [0, 0, 0, 1, 1, 2], [0], [0]>} : vector<1x24x40xbf16>, vector<1x40x128xbf16>, vector<1x24x128xf32> -> vector<1x24x128xf32>
    "tpu.trace_stop"() : () -> ()
    %43 = vector.shape_cast %42 : vector<1x24x128xf32> to vector<24x128xf32>
    %44 = arith.truncf %43 : vector<24x128xf32> to vector<24x128xbf16>
    %cst_23 = arith.constant dense<0.000000e+00> : vector<24x128xf32>
    %45 = tpu.matmul %44, %27, %cst_23 {dimension_numbers = #tpu.dot_dimension_numbers<[1], [0], [0], [1], [0, 0, 1, 1], [], []>} : vector<24x128xbf16>, vector<128x128xbf16>, vector<24x128xf32> -> vector<24x128xf32>
    %46 = vector.shape_cast %45 : vector<24x128xf32> to vector<1x24x128xf32>
    %47 = arith.addf %3, %46 : vector<1x24x128xf32>
    %c0_24 = arith.constant 0 : index
    %c0_25 = arith.constant 0 : index
    %c0_26 = arith.constant 0 : index
    %48 = vector.load %arg5[%c0_24, %c0_25, %c0_26] : memref<1x1x24xf32, #tpu.memory_space<vmem>>, vector<1x1x24xf32>
    %c0_27 = arith.constant 0 : index
    %c0_28 = arith.constant 0 : index
    %c0_29 = arith.constant 0 : index
    %49 = vector.load %arg10[%c0_27, %c0_28, %c0_29] : memref<1x128x128xbf16, #tpu.memory_space<vmem>>, vector<1x128x128xbf16>
    %50 = vector.shape_cast %49 : vector<1x128x128xbf16> to vector<128x128xbf16>
    "tpu.trace_start"() <{level = 10 : i32, message = "bqd,bkd->bqk"}> : () -> ()
    %cst_30 = arith.constant dense<0.000000e+00> : vector<1x40x24xf32>
    %51 = tpu.matmul %22, %20, %cst_30 {dimension_numbers = #tpu.dot_dimension_numbers<[2], [2], [1], [1], [0, 0, 0, 1, 1, 1], [0], [0]>} : vector<1x40x128xbf16>, vector<1x24x128xbf16>, vector<1x40x24xf32> -> vector<1x40x24xf32>
    "tpu.trace_stop"() : () -> ()
    %52 = vector.broadcast %48 : vector<1x1x24xf32> to vector<1x40x24xf32>
    %53 = arith.addf %51, %52 : vector<1x40x24xf32>
    %cst_31 = arith.constant dense<0xFF800000> : vector<1x40xf32>
    %54 = vector.multi_reduction <maximumf>, %53, %cst_31 [2] : vector<1x40x24xf32> to vector<1x40xf32>
    %55 = vector.shape_cast %54 : vector<1x40xf32> to vector<1x40x1xf32>
    %56 = vector.broadcast %55 : vector<1x40x1xf32> to vector<1x40x24xf32>
    %57 = arith.subf %53, %56 : vector<1x40x24xf32>
    %58 = math.exp %57 : vector<1x40x24xf32>
    %cst_32 = arith.constant dense<0.000000e+00> : vector<1x40xf32>
    %59 = vector.multi_reduction <add>, %58, %cst_32 [2] : vector<1x40x24xf32> to vector<1x40xf32>
    %60 = vector.shape_cast %59 : vector<1x40xf32> to vector<1x40x1xf32>
    %61 = tpu.reciprocal %60 {approx = true} : vector<1x40x1xf32> -> vector<1x40x1xf32>
    %62 = vector.broadcast %61 : vector<1x40x1xf32> to vector<1x40x24xf32>
    %63 = arith.mulf %58, %62 : vector<1x40x24xf32>
    %64 = arith.truncf %63 : vector<1x40x24xf32> to vector<1x40x24xbf16>
    "tpu.trace_start"() <{level = 10 : i32, message = "bqk,bkd->bqd"}> : () -> ()
    %cst_33 = arith.constant dense<0.000000e+00> : vector<1x40x128xf32>
    %65 = tpu.matmul %64, %21, %cst_33 {dimension_numbers = #tpu.dot_dimension_numbers<[2], [1], [1], [2], [0, 0, 0, 1, 1, 2], [0], [0]>} : vector<1x40x24xbf16>, vector<1x24x128xbf16>, vector<1x40x128xf32> -> vector<1x40x128xf32>
    "tpu.trace_stop"() : () -> ()
    %66 = vector.shape_cast %65 : vector<1x40x128xf32> to vector<40x128xf32>
    %67 = arith.truncf %66 : vector<40x128xf32> to vector<40x128xbf16>
    %cst_34 = arith.constant dense<0.000000e+00> : vector<40x128xf32>
    %68 = tpu.matmul %67, %50, %cst_34 {dimension_numbers = #tpu.dot_dimension_numbers<[1], [0], [0], [1], [0, 0, 1, 1], [], []>} : vector<40x128xbf16>, vector<128x128xbf16>, vector<40x128xf32> -> vector<40x128xf32>
    %69 = vector.shape_cast %68 : vector<40x128xf32> to vector<1x40x128xf32>
    %70 = arith.addf %4, %69 : vector<1x40x128xf32>
    %c0_35 = arith.constant 0 : index
    %c0_36 = arith.constant 0 : index
    %c0_37 = arith.constant 0 : index
    %71 = vector.load %arg11[%c0_35, %c0_36, %c0_37] : memref<1x24x128xf32, #tpu.memory_space<vmem>>, vector<1x24x128xf32>
    tpu.vector_store %arg11[%c0_35, %c0_36, %c0_37], %47 {strides = array<i32>} : memref<1x24x128xf32, #tpu.memory_space<vmem>>, vector<1x24x128xf32>,
    %c0_38 = arith.constant 0 : index
    %c0_39 = arith.constant 0 : index
    %c0_40 = arith.constant 0 : index
    %72 = vector.load %arg12[%c0_38, %c0_39, %c0_40] : memref<1x40x128xf32, #tpu.memory_space<vmem>>, vector<1x40x128xf32>
    tpu.vector_store %arg12[%c0_38, %c0_39, %c0_40], %70 {strides = array<i32>} : memref<1x40x128xf32, #tpu.memory_space<vmem>>, vector<1x40x128xf32>,
    return
  }
  func.func @transform_0(%arg0: i32, %arg1: i32, %arg2: memref<2xi32, #tpu.memory_space<smem>>) -> (i32, i32, i32) {
    %c0_i32 = arith.constant 0 : i32
    %c0_i32_0 = arith.constant 0 : i32
    %c0_i32_1 = arith.constant 0 : i32
    return %arg0, %c0_i32, %c0_i32_0 : i32, i32, i32
  }
  func.func @transform_1(%arg0: i32, %arg1: i32, %arg2: memref<2xi32, #tpu.memory_space<smem>>) -> (i32, i32, i32) {
    %c0_i32 = arith.constant 0 : i32
    %c0_i32_0 = arith.constant 0 : i32
    %c0_i32_1 = arith.constant 0 : i32
    return %arg0, %c0_i32, %c0_i32_0 : i32, i32, i32
  }
  func.func @transform_2(%arg0: i32, %arg1: i32, %arg2: memref<2xi32, #tpu.memory_space<smem>>) -> (i32, i32, i32) {
    %c0_i32 = arith.constant 0 : i32
    %c0_i32_0 = arith.constant 0 : i32
    %c0_i32_1 = arith.constant 0 : i32
    return %arg0, %c0_i32, %c0_i32_0 : i32, i32, i32
  }
  func.func @transform_3(%arg0: i32, %arg1: i32, %arg2: memref<2xi32, #tpu.memory_space<smem>>) -> (i32, i32, i32) {
    %c0_i32 = arith.constant 0 : i32
    %c0_i32_0 = arith.constant 0 : i32
    %c0_i32_1 = arith.constant 0 : i32
    return %arg0, %c0_i32, %c0_i32_0 : i32, i32, i32
  }
  func.func @transform_4(%arg0: i32, %arg1: i32, %arg2: memref<2xi32, #tpu.memory_space<smem>>) -> (i32, i32, i32) {
    %0 = arith.index_cast %arg1 : i32 to index
    %1 = memref.load %arg2[%0] : memref<2xi32, #tpu.memory_space<smem>>
    %c0_i32 = arith.constant 0 : i32
    %c0_i32_0 = arith.constant 0 : i32
    %c0_i32_1 = arith.constant 0 : i32
    return %1, %c0_i32, %c0_i32_0 : i32, i32, i32
  }
  func.func @transform_5(%arg0: i32, %arg1: i32, %arg2: memref<2xi32, #tpu.memory_space<smem>>) -> (i32, i32, i32) {
    %0 = arith.index_cast %arg1 : i32 to index
    %1 = memref.load %arg2[%0] : memref<2xi32, #tpu.memory_space<smem>>
    %c0_i32 = arith.constant 0 : i32
    %c0_i32_0 = arith.constant 0 : i32
    %c0_i32_1 = arith.constant 0 : i32
    return %1, %c0_i32, %c0_i32_0 : i32, i32, i32
  }
  func.func @transform_6(%arg0: i32, %arg1: i32, %arg2: memref<2xi32, #tpu.memory_space<smem>>) -> (i32, i32, i32) {
    %0 = arith.index_cast %arg1 : i32 to index
    %1 = memref.load %arg2[%0] : memref<2xi32, #tpu.memory_space<smem>>
    %c0_i32 = arith.constant 0 : i32
    %c0_i32_0 = arith.constant 0 : i32
    %c0_i32_1 = arith.constant 0 : i32
    return %1, %c0_i32, %c0_i32_0 : i32, i32, i32
  }
  func.func @transform_7(%arg0: i32, %arg1: i32, %arg2: memref<2xi32, #tpu.memory_space<smem>>) -> (i32, i32, i32) {
    %0 = arith.index_cast %arg1 : i32 to index
    %1 = memref.load %arg2[%0] : memref<2xi32, #tpu.memory_space<smem>>
    %c0_i32 = arith.constant 0 : i32
    %c0_i32_0 = arith.constant 0 : i32
    %c0_i32_1 = arith.constant 0 : i32
    return %1, %c0_i32, %c0_i32_0 : i32, i32, i32
  }
  func.func @transform_8(%arg0: i32, %arg1: i32, %arg2: memref<2xi32, #tpu.memory_space<smem>>) -> (i32, i32, i32) {
    %c0_i32 = arith.constant 0 : i32
    %c0_i32_0 = arith.constant 0 : i32
    %c0_i32_1 = arith.constant 0 : i32
    return %arg0, %c0_i32, %c0_i32_0 : i32, i32, i32
  }
  func.func @transform_9(%arg0: i32, %arg1: i32, %arg2: memref<2xi32, #tpu.memory_space<smem>>) -> (i32, i32, i32) {
    %c0_i32 = arith.constant 0 : i32
    %c0_i32_0 = arith.constant 0 : i32
    %c0_i32_1 = arith.constant 0 : i32
    return %arg0, %c0_i32, %c0_i32_0 : i32, i32, i32
  }
}

</mosaic_0001>

<llo_original>
// kernel: tpu_custom_call.1
$region0: #{tpu_custom_call.1}
  #allocation0 [shape = 'u32[]', space=smem, size = 0x4, offset = 0x4, fixed_abs, tag = 'smem constant byte address 0x4 - core index']
  #allocation1 [shape = 'u32[72,128]{1,0:T(1,128)}', space=vmem, size = 0x9000, scoped, tag = 'internal scratch']
  #allocation2 [shape = 's32[1]{0}', space=sflag, size = 0x4, scoped, tag = 'scoped memory for tpu_custom_call.1']
  #allocation3 [shape = 'u8[512]{0}', space=smem, size = 0x200, scoped, tag = 'prefetched SMEM operand 0']
  %s0 = inlined_call_operand.hbm [shape: s32[2], index: 0, kind: input, shape index: {}]
  %s1 = inlined_call_operand.hbm [shape: f32[2,24,128], index: 1, kind: input, shape index: {}]
  %s2 = inlined_call_operand.hbm [shape: f32[2,40,128], index: 2, kind: input, shape index: {}]
  %s3 = inlined_call_operand.vmem [shape: f32[2,1,24], index: 3, kind: input, shape index: {}]
  %s4 = inlined_call_operand.hbm [shape: f32[2,1,40], index: 4, kind: input, shape index: {}]
  %s5 = inlined_call_operand.hbm [shape: bf16[4,128,384], index: 5, kind: input, shape index: {}]
  %s6 = inlined_call_operand.hbm [shape: bf16[4,128,384], index: 6, kind: input, shape index: {}]
  %s7 = inlined_call_operand.hbm [shape: bf16[4,128,128], index: 7, kind: input, shape index: {}]
  %s8 = inlined_call_operand.hbm [shape: bf16[4,128,128], index: 8, kind: input, shape index: {}]
  %s9 = inlined_call_operand.hbm [shape: f32[2,24,128], index: 9, kind: output, shape index: {0}]
  %s10 = inlined_call_operand.hbm [shape: f32[2,40,128], index: 10, kind: output, shape index: {1}]
  %11 = xla_tuple %s9, %s10
  %s12 = sld [smem:[#allocation0]]
  $region105: #{tpu_custom_call.1} parent=0
    _
  %s14 = ssub.s32 1, %s12
  %s15 = scalar_select 0, %s14, %s12
  %s17 = sshll.u32 %s0, 4
  %s18 = int_to_ptr.hbm [resolvable:$true] %s17
  %20 = dma.hbm_to_smem %s18, 16, [#allocation3], [#allocation2]
  %22 = dma.done [#allocation2], 16
  %23 = sfence
  $region1: #{tpu_custom_call.1} parent=0
    #allocation4 [shape = 'u8[24576]{0}', space=vmem, size = 0x6000, scoped, tag = 'input window, operand 1']
    #allocation5 [shape = 's32[2]{0}', space=sflag, size = 0x8, scoped, tag = 'scoped memory for tpu_custom_call.1']
    #allocation6 [shape = 's32[2]{0}', space=sflag, size = 0x8, scoped, tag = 'scoped memory for tpu_custom_call.1']
    #allocation7 [shape = 'u8[40960]{0}', space=vmem, size = 0xa000, scoped, tag = 'input window, operand 2']
    #allocation8 [shape = 's32[2]{0}', space=sflag, size = 0x8, scoped, tag = 'scoped memory for tpu_custom_call.1']
    #allocation9 [shape = 'u8[1024]{0}', space=vmem, size = 0x400, scoped, tag = 'input window, operand 4']
    #allocation10 [shape = 'u8[196608]{0}', space=vmem, size = 0x30000, scoped, tag = 'input window, operand 5']
    #allocation11 [shape = 's32[2]{0}', space=sflag, size = 0x8, scoped, tag = 'scoped memory for tpu_custom_call.1']
    #allocation12 [shape = 'u8[196608]{0}', space=vmem, size = 0x30000, scoped, tag = 'input window, operand 6']
    #allocation13 [shape = 'u8[65536]{0}', space=vmem, size = 0x10000, scoped, tag = 'input window, operand 7']
    #allocation14 [shape = 's32[2]{0}', space=sflag, size = 0x8, scoped, tag = 'scoped memory for tpu_custom_call.1']
    #allocation15 [shape = 'u8[65536]{0}', space=vmem, size = 0x10000, scoped, tag = 'input window, operand 8']
    #allocation16 [shape = 'u8[24576]{0}', space=vmem, size = 0x6000, scoped, tag = 'output window, operand 0']
    #allocation17 [shape = 'u8[40960]{0}', space=vmem, size = 0xa000, scoped, tag = 'output window, operand 1']
    #allocation18 [shape = 's32[2]{0}', space=sflag, size = 0x8, scoped, tag = 'scoped memory for tpu_custom_call.1']
    %24 = vsyncpa [#allocation5], 0
    %s25 = scalar_lea.sflag [#allocation5], 1
    %26 = vsyncpa %s25, 0
    %27 = vsyncpa [#allocation8], 0
    %s28 = scalar_lea.sflag [#allocation8], 1
    %29 = vsyncpa %s28, 0
    %30 = vsyncpa [#allocation11], 0
    %s31 = scalar_lea.sflag [#allocation11], 1
    %32 = vsyncpa %s31, 0
    %33 = vsyncpa [#allocation14], 0
    %s34 = scalar_lea.sflag [#allocation14], 1
    %35 = vsyncpa %s34, 0
    %36 = vsyncpa [#allocation6], 0
    %s37 = scalar_lea.sflag [#allocation6], 1
    %38 = vsyncpa %s37, 0
    %39 = vsyncpa [#allocation18], 0
    %s40 = scalar_lea.sflag [#allocation18], 1
    %41 = vsyncpa %s40, 0
    loop: start=0, step=1, limit=6
    $region2: #{tpu_custom_call.1} parent=1 // loop_pre_header
      _
    $region3: #{tpu_custom_call.1} parent=1 // loop_header
      %s43 = sphi 0, %s47
      %p44 = scmp.ge.s32.totalorder %s43, 6
      %s50 = sphi 0, %s62
      %s51 = sphi 0, %s58
      %s52 = sphi 0, %s50
      %s53 = sphi 0, %s51
      %s54 = sphi 0, %s52
      %s55 = sphi 0, %s53
      %s65 = sphi 0, %s67
      %s68 = sphi 0, %s65
      %s69 = sphi 0, %s68
      %s85 = sphi 0, %s69
      %s91 = sphi 0, %s93
      %s94 = sphi 0, %s91
      %s95 = sphi 0, %s94
      %s111 = sphi 0, %s95
      %s117 = sphi 0, %s119
      %s120 = sphi 0, %s117
      %s121 = sphi 0, %s120
      %s137 = sphi 0, %s121
      %s143 = sphi 0, %s145
      %s146 = sphi 0, %s143
      %s147 = sphi 0, %s146
      %s163 = sphi 0, %s147
      %s171 = sphi 0, %s173
      %s174 = sphi 0, %s171
      %s175 = sphi 0, %s174
      %s191 = sphi 0, %s175
      %s199 = sphi 0, %s201
      %s202 = sphi 0, %s199
      %s203 = sphi 0, %s202
      %s219 = sphi 0, %s203
      %s227 = sphi 0, %s229
      %s230 = sphi 0, %s227
      %s231 = sphi 0, %s230
      %s247 = sphi 0, %s231
      %s255 = sphi 0, %s257
      %s258 = sphi 0, %s255
      %s259 = sphi 0, %s258
      %s275 = sphi 0, %s259
      %s281 = sphi 0, %s283
      %s284 = sphi 0, %s281
      %s285 = sphi 0, %s284
      %s301 = sphi 0, %s285
      %s307 = sphi 0, %s309
      %s310 = sphi 0, %s307
      %s311 = sphi 0, %s310
      %s327 = sphi 0, %s311
    $region4: #{tpu_custom_call.1} parent=1 // loop_header_branch
      %46 = sbr.rel (%p44) target = $region8
    $region5: #{tpu_custom_call.1} parent=1 // loop_body
      %s48 = ssub.s32 %s43, 1
      %s49 = ssub.s32 %s43, 2
      %s56 = sadd.s32 1, %s51
      %p57 = scmp.ge.s32.totalorder %s56, 2
      %s58 = scalar_select %p57, 0, %s56
      %s59 = sadd.s32 1, %s50
      %s60 = scalar_select %p57, %s59, %s50
      %p61 = scmp.ge.s32.totalorder %s60, 2
      %s62 = scalar_select %p61, 0, %s60
      %s63 = ssub.s32 %s50, %s62
      %p64 = scmp.eq.s32.totalorder %s63, 0
      %s66 = sadd.s32 %s65, 1
      %s67 = scalar_select %p64, %s65, %s66
      %p70 = pneg %p64
      %p71 = scmp.eq.s32.totalorder %s43, 3
      %p72 = por %p70, %p71
      %p73 = scmp.ne.s32.totalorder %s65, %s68
      %p74 = scmp.eq.s32.totalorder %s43, 0
      %p75 = por %p73, %p74
      %p76 = scmp.ne.s32.totalorder %s65, %s68
      %p77 = scmp.eq.s32.totalorder %s48, 3
      %p78 = por %p76, %p77
      %p79 = scmp.ne.s32.totalorder %s68, %s69
      %p80 = scmp.eq.s32.totalorder %s48, 0
      %p81 = por %p79, %p80
      %p82 = scmp.ne.s32.totalorder %s68, %s69
      %p83 = scmp.eq.s32.totalorder %s49, 3
      %p84 = por %p82, %p83
      %p86 = scmp.ne.s32.totalorder %s69, %s85
      %p87 = scmp.eq.s32.totalorder %s49, 0
      %p88 = por %p86, %p87
      %s89 = ssub.s32 %s50, %s62
      %p90 = scmp.eq.s32.totalorder %s89, 0
      %s92 = sadd.s32 %s91, 1
      %s93 = scalar_select %p90, %s91, %s92
      %p96 = pneg %p90
      %p97 = scmp.eq.s32.totalorder %s43, 3
      %p98 = por %p96, %p97
      %p99 = scmp.ne.s32.totalorder %s91, %s94
      %p100 = scmp.eq.s32.totalorder %s43, 0
      %p101 = por %p99, %p100
      %p102 = scmp.ne.s32.totalorder %s91, %s94
      %p103 = scmp.eq.s32.totalorder %s48, 3
      %p104 = por %p102, %p103
      %p105 = scmp.ne.s32.totalorder %s94, %s95
      %p106 = scmp.eq.s32.totalorder %s48, 0
      %p107 = por %p105, %p106
      %p108 = scmp.ne.s32.totalorder %s94, %s95
      %p109 = scmp.eq.s32.totalorder %s49, 3
      %p110 = por %p108, %p109
      %p112 = scmp.ne.s32.totalorder %s95, %s111
      %p113 = scmp.eq.s32.totalorder %s49, 0
      %p114 = por %p112, %p113
      %s115 = ssub.s32 %s50, %s62
      %p116 = scmp.eq.s32.totalorder %s115, 0
      %s118 = sadd.s32 %s117, 1
      %s119 = scalar_select %p116, %s117, %s118
      %p122 = pneg %p116
      %p123 = scmp.eq.s32.totalorder %s43, 3
      %p124 = por %p122, %p123
      %p125 = scmp.ne.s32.totalorder %s117, %s120
      %p126 = scmp.eq.s32.totalorder %s43, 0
      %p127 = por %p125, %p126
      %p128 = scmp.ne.s32.totalorder %s117, %s120
      %p129 = scmp.eq.s32.totalorder %s48, 3
      %p130 = por %p128, %p129
      %p131 = scmp.ne.s32.totalorder %s120, %s121
      %p132 = scmp.eq.s32.totalorder %s48, 0
      %p133 = por %p131, %p132
      %p134 = scmp.ne.s32.totalorder %s120, %s121
      %p135 = scmp.eq.s32.totalorder %s49, 3
      %p136 = por %p134, %p135
      %p138 = scmp.ne.s32.totalorder %s121, %s137
      %p139 = scmp.eq.s32.totalorder %s49, 0
      %p140 = por %p138, %p139
      %s141 = ssub.s32 %s50, %s62
      %p142 = scmp.eq.s32.totalorder %s141, 0
      %s144 = sadd.s32 %s143, 1
      %s145 = scalar_select %p142, %s143, %s144
      %p148 = pneg %p142
      %p149 = scmp.eq.s32.totalorder %s43, 3
      %p150 = por %p148, %p149
      %p151 = scmp.ne.s32.totalorder %s143, %s146
      %p152 = scmp.eq.s32.totalorder %s43, 0
      %p153 = por %p151, %p152
      %p154 = scmp.ne.s32.totalorder %s143, %s146
      %p155 = scmp.eq.s32.totalorder %s48, 3
      %p156 = por %p154, %p155
      %p157 = scmp.ne.s32.totalorder %s146, %s147
      %p158 = scmp.eq.s32.totalorder %s48, 0
      %p159 = por %p157, %p158
      %p160 = scmp.ne.s32.totalorder %s146, %s147
      %p161 = scmp.eq.s32.totalorder %s49, 3
      %p162 = por %p160, %p161
      %p164 = scmp.ne.s32.totalorder %s147, %s163
      %p165 = scmp.eq.s32.totalorder %s49, 0
      %p166 = por %p164, %p165
      %s167 = sld [smem:[#allocation3 + %s51]]
      %s168 = sld [smem:[#allocation3 + %s58]]
      %s169 = ssub.s32 %s167, %s168
      %p170 = scmp.eq.s32.totalorder %s169, 0
      %s172 = sadd.s32 %s171, 1
      %s173 = scalar_select %p170, %s171, %s172
      %p176 = pneg %p170
      %p177 = scmp.eq.s32.totalorder %s43, 3
      %p178 = por %p176, %p177
      %p179 = scmp.ne.s32.totalorder %s171, %s174
      %p180 = scmp.eq.s32.totalorder %s43, 0
      %p181 = por %p179, %p180
      %p182 = scmp.ne.s32.totalorder %s171, %s174
      %p183 = scmp.eq.s32.totalorder %s48, 3
      %p184 = por %p182, %p183
      %p185 = scmp.ne.s32.totalorder %s174, %s175
      %p186 = scmp.eq.s32.totalorder %s48, 0
      %p187 = por %p185, %p186
      %p188 = scmp.ne.s32.totalorder %s174, %s175
      %p189 = scmp.eq.s32.totalorder %s49, 3
      %p190 = por %p188, %p189
      %p192 = scmp.ne.s32.totalorder %s175, %s191
      %p193 = scmp.eq.s32.totalorder %s49, 0
      %p194 = por %p192, %p193
      %s195 = sld [smem:[#allocation3 + %s51]]
      %s196 = sld [smem:[#allocation3 + %s58]]
      %s197 = ssub.s32 %s195, %s196
      %p198 = scmp.eq.s32.totalorder %s197, 0
      %s200 = sadd.s32 %s199, 1
      %s201 = scalar_select %p198, %s199, %s200
      %p204 = pneg %p198
      %p205 = scmp.eq.s32.totalorder %s43, 3
      %p206 = por %p204, %p205
      %p207 = scmp.ne.s32.totalorder %s199, %s202
      %p208 = scmp.eq.s32.totalorder %s43, 0
      %p209 = por %p207, %p208
      %p210 = scmp.ne.s32.totalorder %s199, %s202
      %p211 = scmp.eq.s32.totalorder %s48, 3
      %p212 = por %p210, %p211
      %p213 = scmp.ne.s32.totalorder %s202, %s203
      %p214 = scmp.eq.s32.totalorder %s48, 0
      %p215 = por %p213, %p214
      %p216 = scmp.ne.s32.totalorder %s202, %s203
      %p217 = scmp.eq.s32.totalorder %s49, 3
      %p218 = por %p216, %p217
      %p220 = scmp.ne.s32.totalorder %s203, %s219
      %p221 = scmp.eq.s32.totalorder %s49, 0
      %p222 = por %p220, %p221
      %s223 = sld [smem:[#allocation3 + %s51]]
      %s224 = sld [smem:[#allocation3 + %s58]]
      %s225 = ssub.s32 %s223, %s224
      %p226 = scmp.eq.s32.totalorder %s225, 0
      %s228 = sadd.s32 %s227, 1
      %s229 = scalar_select %p226, %s227, %s228
      %p232 = pneg %p226
      %p233 = scmp.eq.s32.totalorder %s43, 3
      %p234 = por %p232, %p233
      %p235 = scmp.ne.s32.totalorder %s227, %s230
      %p236 = scmp.eq.s32.totalorder %s43, 0
      %p237 = por %p235, %p236
      %p238 = scmp.ne.s32.totalorder %s227, %s230
      %p239 = scmp.eq.s32.totalorder %s48, 3
      %p240 = por %p238, %p239
      %p241 = scmp.ne.s32.totalorder %s230, %s231
      %p242 = scmp.eq.s32.totalorder %s48, 0
      %p243 = por %p241, %p242
      %p244 = scmp.ne.s32.totalorder %s230, %s231
      %p245 = scmp.eq.s32.totalorder %s49, 3
      %p246 = por %p244, %p245
      %p248 = scmp.ne.s32.totalorder %s231, %s247
      %p249 = scmp.eq.s32.totalorder %s49, 0
      %p250 = por %p248, %p249
      %s251 = sld [smem:[#allocation3 + %s51]]
      %s252 = sld [smem:[#allocation3 + %s58]]
      %s253 = ssub.s32 %s251, %s252
      %p254 = scmp.eq.s32.totalorder %s253, 0
      %s256 = sadd.s32 %s255, 1
      %s257 = scalar_select %p254, %s255, %s256
      %p260 = pneg %p254
      %p261 = scmp.eq.s32.totalorder %s43, 3
      %p262 = por %p260, %p261
      %p263 = scmp.ne.s32.totalorder %s255, %s258
      %p264 = scmp.eq.s32.totalorder %s43, 0
      %p265 = por %p263, %p264
      %p266 = scmp.ne.s32.totalorder %s255, %s258
      %p267 = scmp.eq.s32.totalorder %s48, 3
      %p268 = por %p266, %p267
      %p269 = scmp.ne.s32.totalorder %s258, %s259
      %p270 = scmp.eq.s32.totalorder %s48, 0
      %p271 = por %p269, %p270
      %p272 = scmp.ne.s32.totalorder %s258, %s259
      %p273 = scmp.eq.s32.totalorder %s49, 3
      %p274 = por %p272, %p273
      %p276 = scmp.ne.s32.totalorder %s259, %s275
      %p277 = scmp.eq.s32.totalorder %s49, 0
      %p278 = por %p276, %p277
      %s279 = ssub.s32 %s50, %s62
      %p280 = scmp.eq.s32.totalorder %s279, 0
      %s282 = sadd.s32 %s281, 1
      %s283 = scalar_select %p280, %s281, %s282
      %p286 = pneg %p280
      %p287 = scmp.eq.s32.totalorder %s43, 3
      %p288 = por %p286, %p287
      %p289 = scmp.ne.s32.totalorder %s281, %s284
      %p290 = scmp.eq.s32.totalorder %s43, 0
      %p291 = por %p289, %p290
      %p292 = scmp.ne.s32.totalorder %s281, %s284
      %p293 = scmp.eq.s32.totalorder %s48, 3
      %p294 = por %p292, %p293
      %p295 = scmp.ne.s32.totalorder %s284, %s285
      %p296 = scmp.eq.s32.totalorder %s48, 0
      %p297 = por %p295, %p296
      %p298 = scmp.ne.s32.totalorder %s284, %s285
      %p299 = scmp.eq.s32.totalorder %s49, 3
      %p300 = por %p298, %p299
      %p302 = scmp.ne.s32.totalorder %s285, %s301
      %p303 = scmp.eq.s32.totalorder %s49, 0
      %p304 = por %p302, %p303
      %s305 = ssub.s32 %s50, %s62
      %p306 = scmp.eq.s32.totalorder %s305, 0
      %s308 = sadd.s32 %s307, 1
      %s309 = scalar_select %p306, %s307, %s308
      %p312 = pneg %p306
      %p313 = scmp.eq.s32.totalorder %s43, 3
      %p314 = por %p312, %p313
      %p315 = scmp.ne.s32.totalorder %s307, %s310
      %p316 = scmp.eq.s32.totalorder %s43, 0
      %p317 = por %p315, %p316
      %p318 = scmp.ne.s32.totalorder %s307, %s310
      %p319 = scmp.eq.s32.totalorder %s48, 3
      %p320 = por %p318, %p319
      %p321 = scmp.ne.s32.totalorder %s310, %s311
      %p322 = scmp.eq.s32.totalorder %s48, 0
      %p323 = por %p321, %p322
      %p324 = scmp.ne.s32.totalorder %s310, %s311
      %p325 = scmp.eq.s32.totalorder %s49, 3
      %p326 = por %p324, %p325
      %p328 = scmp.ne.s32.totalorder %s311, %s327
      %p329 = scmp.eq.s32.totalorder %s49, 0
      %p330 = por %p328, %p329
      %p331 = scmp.le.s32.totalorder 1, %s43
      %p332 = scmp.lt.s32.totalorder %s43, 5
      %p333 = pnand %p331, %p332
      %p334 = pneg %p333
      // Predicated region
      $region9: #{tpu_custom_call.1} parent=5 // pred_check
        _
      $region10: #{tpu_custom_call.1} parent=5 // pred_check_branch
        %336 = sbr.rel (%p333) target = $region12
      $region11: #{tpu_custom_call.1} parent=5 // pred_region
        %s337 = ssub.s32 %s43, 1
      $region12: #{tpu_custom_call.1} parent=5 // pred_fallthru
        _
      %p338 = scmp.lt.s32.totalorder %s43, 4
      // Predicated region
      $region13: #{tpu_custom_call.1} parent=5 // pred_check
        %p339 = pneg %p338
      $region14: #{tpu_custom_call.1} parent=5 // pred_check_branch
        %341 = sbr.rel (%p339) target = $region16
      $region15: #{tpu_custom_call.1} parent=5 // pred_region
        // Predicated region
        $region17: #{tpu_custom_call.1} parent=15 // pred_check
          %p342 = pneg %p75
        $region18: #{tpu_custom_call.1} parent=15 // pred_check_branch
          %344 = sbr.rel (%p342) target = $region20
        $region19: #{tpu_custom_call.1} parent=15 // pred_region
          %s345 = sand.u32 %s65, 1
          %s346 = scalar_lea.sflag [#allocation5], %s345
          %s347 = sand.u32 %s65, 1
          %s348 = smul.addr %s347, 24
          %s349 = scalar_lea.vmem [#allocation4], %s348
          %351 = vsyncadd %s346, 0
          %s352 = smul.addr %s50, 3
          %s353 = smul.addr %s352, 8
          %s354 = scalar_lea.hbm %s1, %s353
          %s355 = sshll.u32 %s354, 4
          %s356 = int_to_ptr.hbm [resolvable:$true] %s355
          %s357 = sshll.u32 %s349, 4
          %s358 = int_to_ptr.vmem [resolvable:$true] %s357
          %363 = dma.hbm_to_vmem [thread:$0]  %s356, 384, %s358, %s346, 128, 128, 8
        $region20: #{tpu_custom_call.1} parent=15 // pred_fallthru
          _
        // Predicated region
        $region21: #{tpu_custom_call.1} parent=15 // pred_check
          %p364 = pneg %p101
        $region22: #{tpu_custom_call.1} parent=15 // pred_check_branch
          %366 = sbr.rel (%p364) target = $region24
        $region23: #{tpu_custom_call.1} parent=15 // pred_region
          %s367 = sand.u32 %s43, 1
          %s368 = scalar_lea.sflag [#allocation8], %s367
          %s369 = sand.u32 %s91, 1
          %s370 = smul.addr %s369, 40
          %s371 = scalar_lea.vmem [#allocation7], %s370
          %373 = vsyncadd %s368, 0
          %s374 = smul.addr %s50, 5
          %s375 = smul.addr %s374, 8
          %s376 = scalar_lea.hbm %s2, %s375
          %s377 = sshll.u32 %s376, 4
          %s378 = int_to_ptr.hbm [resolvable:$true] %s377
          %s379 = sshll.u32 %s371, 4
          %s380 = int_to_ptr.vmem [resolvable:$true] %s379
          %385 = dma.hbm_to_vmem [thread:$0]  %s378, 640, %s380, %s368, 128, 128, 8
        $region24: #{tpu_custom_call.1} parent=15 // pred_fallthru
          _
        // Predicated region
        $region25: #{tpu_custom_call.1} parent=15 // pred_check
          %p386 = pneg %p127
        $region26: #{tpu_custom_call.1} parent=15 // pred_check_branch
          %388 = sbr.rel (%p386) target = $region28
        $region27: #{tpu_custom_call.1} parent=15 // pred_region
          %p389 = scmp.lt.s32.totalorder %s50, 1
          %s390 = scalar_select %p389, %s50, 1
          %s391 = scalar_lea.vmem %s3, %s390
        $region28: #{tpu_custom_call.1} parent=15 // pred_fallthru
          _
        // Predicated region
        $region29: #{tpu_custom_call.1} parent=15 // pred_check
          %p392 = pneg %p153
        $region30: #{tpu_custom_call.1} parent=15 // pred_check_branch
          %394 = sbr.rel (%p392) target = $region32
        $region31: #{tpu_custom_call.1} parent=15 // pred_region
          %s395 = sand.u32 %s43, 1
          %s396 = scalar_lea.sflag [#allocation8], %s395
          %s397 = sand.u32 %s143, 1
          %s398 = scalar_lea.vmem [#allocation9], %s397
          %400 = vsyncadd %s396, 0
          %s401 = scalar_lea.hbm %s4, %s50
          %s403 = sshll.u32 %s401, 4
          %s404 = int_to_ptr.hbm [resolvable:$true] %s403
          %s405 = sshll.u32 %s398, 4
          %s406 = int_to_ptr.vmem [resolvable:$true] %s405
          %408 = dma.hbm_to_vmem [thread:$0]  %s404, 16, %s406, %s396
        $region32: #{tpu_custom_call.1} parent=15 // pred_fallthru
          _
        // Predicated region
        $region33: #{tpu_custom_call.1} parent=15 // pred_check
          %p409 = pneg %p181
        $region34: #{tpu_custom_call.1} parent=15 // pred_check_branch
          %411 = sbr.rel (%p409) target = $region36
        $region35: #{tpu_custom_call.1} parent=15 // pred_region
          %s412 = sand.u32 %s43, 1
          %s413 = scalar_lea.sflag [#allocation11], %s412
          %s414 = sand.u32 %s171, 1
          %s415 = smul.addr %s414, 192
          %s416 = scalar_lea.vmem [#allocation10], %s415
          %s417 = sld [smem:[#allocation3 + %s51]]
          %419 = vsyncadd %s413, 0
          %s420 = smul.addr %s417, 48
          %s421 = smul.addr %s420, 4
          %s422 = scalar_lea.hbm %s5, %s421
          %s423 = sshll.u32 %s422, 4
          %s424 = int_to_ptr.hbm [resolvable:$true] %s423
          %s425 = sshll.u32 %s416, 4
          %s426 = int_to_ptr.vmem [resolvable:$true] %s425
          %431 = dma.hbm_to_vmem [thread:$0]  %s424, 3072, %s426, %s413, 192, 192, 12
        $region36: #{tpu_custom_call.1} parent=15 // pred_fallthru
          _
        // Predicated region
        $region37: #{tpu_custom_call.1} parent=15 // pred_check
          %p432 = pneg %p209
        $region38: #{tpu_custom_call.1} parent=15 // pred_check_branch
          %434 = sbr.rel (%p432) target = $region40
        $region39: #{tpu_custom_call.1} parent=15 // pred_region
          %s435 = sand.u32 %s43, 1
          %s436 = scalar_lea.sflag [#allocation11], %s435
          %s437 = sand.u32 %s199, 1
          %s438 = smul.addr %s437, 192
          %s439 = scalar_lea.vmem [#allocation12], %s438
          %s440 = sld [smem:[#allocation3 + %s51]]
          %442 = vsyncadd %s436, 0
          %s443 = smul.addr %s440, 48
          %s444 = smul.addr %s443, 4
          %s445 = scalar_lea.hbm %s6, %s444
          %s446 = sshll.u32 %s445, 4
          %s447 = int_to_ptr.hbm [resolvable:$true] %s446
          %s448 = sshll.u32 %s439, 4
          %s449 = int_to_ptr.vmem [resolvable:$true] %s448
          %454 = dma.hbm_to_vmem [thread:$0]  %s447, 3072, %s449, %s436, 192, 192, 12
        $region40: #{tpu_custom_call.1} parent=15 // pred_fallthru
          _
        // Predicated region
        $region41: #{tpu_custom_call.1} parent=15 // pred_check
          %p455 = pneg %p237
        $region42: #{tpu_custom_call.1} parent=15 // pred_check_branch
          %457 = sbr.rel (%p455) target = $region44
        $region43: #{tpu_custom_call.1} parent=15 // pred_region
          %s458 = sand.u32 %s43, 1
          %s459 = scalar_lea.sflag [#allocation14], %s458
          %s460 = sand.u32 %s227, 1
          %s461 = smul.addr %s460, 64
          %s462 = scalar_lea.vmem [#allocation13], %s461
          %s463 = sld [smem:[#allocation3 + %s51]]
          %465 = vsyncadd %s459, 0
          %s466 = smul.addr %s463, 16
          %s467 = smul.addr %s466, 4
          %s468 = scalar_lea.hbm %s7, %s467
          %s469 = sshll.u32 %s468, 4
          %s470 = int_to_ptr.hbm [resolvable:$true] %s469
          %s471 = sshll.u32 %s462, 4
          %s472 = int_to_ptr.vmem [resolvable:$true] %s471
          %477 = dma.hbm_to_vmem [thread:$0]  %s470, 1024, %s472, %s459, 64, 64, 4
        $region44: #{tpu_custom_call.1} parent=15 // pred_fallthru
          _
        // Predicated region
        $region45: #{tpu_custom_call.1} parent=15 // pred_check
          %p478 = pneg %p265
        $region46: #{tpu_custom_call.1} parent=15 // pred_check_branch
          %480 = sbr.rel (%p478) target = $region48
        $region47: #{tpu_custom_call.1} parent=15 // pred_region
          %s481 = sand.u32 %s43, 1
          %s482 = scalar_lea.sflag [#allocation14], %s481
          %s483 = sand.u32 %s255, 1
          %s484 = smul.addr %s483, 64
          %s485 = scalar_lea.vmem [#allocation15], %s484
          %s486 = sld [smem:[#allocation3 + %s51]]
          %488 = vsyncadd %s482, 0
          %s489 = smul.addr %s486, 16
          %s490 = smul.addr %s489, 4
          %s491 = scalar_lea.hbm %s8, %s490
          %s492 = sshll.u32 %s491, 4
          %s493 = int_to_ptr.hbm [resolvable:$true] %s492
          %s494 = sshll.u32 %s485, 4
          %s495 = int_to_ptr.vmem [resolvable:$true] %s494
          %500 = dma.hbm_to_vmem [thread:$0]  %s493, 1024, %s495, %s482, 64, 64, 4
        $region48: #{tpu_custom_call.1} parent=15 // pred_fallthru
          _
      $region16: #{tpu_custom_call.1} parent=5 // pred_fallthru
        _
      %p501 = scmp.le.s32.totalorder 1, %s43
      %p502 = scmp.lt.s32.totalorder %s43, 5
      %p503 = pnand %p501, %p502
      %p504 = pneg %p503
      // Predicated region
      $region49: #{tpu_custom_call.1} parent=5 // pred_check
        _
      $region50: #{tpu_custom_call.1} parent=5 // pred_check_branch
        %506 = sbr.rel (%p503) target = $region52
      $region51: #{tpu_custom_call.1} parent=5 // pred_region
        %s507 = ssub.s32 %s43, 1
        %s508 = sand.u32 %s68, 1
        %s509 = scalar_lea.sflag [#allocation5], %s508
        %s510 = sand.u32 %s68, 1
        %s511 = smul.addr %s510, 24
        %s512 = scalar_lea.vmem [#allocation4], %s511
        // Predicated region
        $region53: #{tpu_custom_call.1} parent=51 // pred_check
          %p513 = pneg %p81
        $region54: #{tpu_custom_call.1} parent=51 // pred_check_branch
          %515 = sbr.rel (%p513) target = $region56
        $region55: #{tpu_custom_call.1} parent=51 // pred_region
          %517 = dma.done %s509, 384
        $region56: #{tpu_custom_call.1} parent=51 // pred_fallthru
          _
        %s518 = sand.u32 %s48, 1
        %s519 = scalar_lea.sflag [#allocation8], %s518
        %s520 = sand.u32 %s94, 1
        %s521 = smul.addr %s520, 40
        %s522 = scalar_lea.vmem [#allocation7], %s521
        // Predicated region
        $region57: #{tpu_custom_call.1} parent=51 // pred_check
          %p523 = pneg %p107
        $region58: #{tpu_custom_call.1} parent=51 // pred_check_branch
          %525 = sbr.rel (%p523) target = $region60
        $region59: #{tpu_custom_call.1} parent=51 // pred_region
          %527 = dma.done %s519, 640
        $region60: #{tpu_custom_call.1} parent=51 // pred_fallthru
          _
        %s528 = sand.u32 %s48, 1
        %s529 = scalar_lea.sflag [#allocation8], %s528
        %s530 = sand.u32 %s146, 1
        %s531 = scalar_lea.vmem [#allocation9], %s530
        // Predicated region
        $region61: #{tpu_custom_call.1} parent=51 // pred_check
          %p532 = pneg %p159
        $region62: #{tpu_custom_call.1} parent=51 // pred_check_branch
          %534 = sbr.rel (%p532) target = $region64
        $region63: #{tpu_custom_call.1} parent=51 // pred_region
          %536 = dma.done %s529, 16
        $region64: #{tpu_custom_call.1} parent=51 // pred_fallthru
          _
        %s537 = sand.u32 %s48, 1
        %s538 = scalar_lea.sflag [#allocation11], %s537
        %s539 = sand.u32 %s174, 1
        %s540 = smul.addr %s539, 192
        %s541 = scalar_lea.vmem [#allocation10], %s540
        // Predicated region
        $region65: #{tpu_custom_call.1} parent=51 // pred_check
          %p542 = pneg %p187
        $region66: #{tpu_custom_call.1} parent=51 // pred_check_branch
          %544 = sbr.rel (%p542) target = $region68
        $region67: #{tpu_custom_call.1} parent=51 // pred_region
          %546 = dma.done %s538, 3072
        $region68: #{tpu_custom_call.1} parent=51 // pred_fallthru
          _
        %s547 = sand.u32 %s48, 1
        %s548 = scalar_lea.sflag [#allocation11], %s547
        %s549 = sand.u32 %s202, 1
        %s550 = smul.addr %s549, 192
        %s551 = scalar_lea.vmem [#allocation12], %s550
        // Predicated region
        $region69: #{tpu_custom_call.1} parent=51 // pred_check
          %p552 = pneg %p215
        $region70: #{tpu_custom_call.1} parent=51 // pred_check_branch
          %554 = sbr.rel (%p552) target = $region72
        $region71: #{tpu_custom_call.1} parent=51 // pred_region
          %556 = dma.done %s548, 3072
        $region72: #{tpu_custom_call.1} parent=51 // pred_fallthru
          _
        %s557 = sand.u32 %s48, 1
        %s558 = scalar_lea.sflag [#allocation14], %s557
        %s559 = sand.u32 %s230, 1
        %s560 = smul.addr %s559, 64
        %s561 = scalar_lea.vmem [#allocation13], %s560
        // Predicated region
        $region73: #{tpu_custom_call.1} parent=51 // pred_check
          %p562 = pneg %p243
        $region74: #{tpu_custom_call.1} parent=51 // pred_check_branch
          %564 = sbr.rel (%p562) target = $region76
        $region75: #{tpu_custom_call.1} parent=51 // pred_region
          %566 = dma.done %s558, 1024
        $region76: #{tpu_custom_call.1} parent=51 // pred_fallthru
          _
        %s567 = sand.u32 %s48, 1
        %s568 = scalar_lea.sflag [#allocation14], %s567
        %s569 = sand.u32 %s258, 1
        %s570 = smul.addr %s569, 64
        %s571 = scalar_lea.vmem [#allocation15], %s570
        // Predicated region
        $region77: #{tpu_custom_call.1} parent=51 // pred_check
          %p572 = pneg %p271
        $region78: #{tpu_custom_call.1} parent=51 // pred_check_branch
          %574 = sbr.rel (%p572) target = $region80
        $region79: #{tpu_custom_call.1} parent=51 // pred_region
          %576 = dma.done %s568, 1024
        $region80: #{tpu_custom_call.1} parent=51 // pred_fallthru
          _
        %s577 = sand.u32 %s68, 1
        %s578 = scalar_lea.sflag [#allocation5], %s577
        %s579 = sand.u32 %s68, 1
        %s580 = smul.addr %s579, 24
        %s581 = scalar_lea.vmem [#allocation4], %s580
        %p582 = pneg %p81
        %p583 = pneg %p78
        %s584 = sand.u32 %s48, 1
        %s585 = scalar_lea.sflag [#allocation8], %s584
        %s586 = sand.u32 %s94, 1
        %s587 = smul.addr %s586, 40
        %s588 = scalar_lea.vmem [#allocation7], %s587
        %p589 = pneg %p107
        %p590 = pneg %p104
        %p591 = scmp.lt.s32.totalorder %s52, 1
        %s592 = scalar_select %p591, %s52, 1
        %s593 = scalar_lea.vmem %s3, %s592
        %p594 = pneg %p133
        %p595 = pneg %p130
        %s596 = sand.u32 %s48, 1
        %s597 = scalar_lea.sflag [#allocation8], %s596
        %s598 = sand.u32 %s146, 1
        %s599 = scalar_lea.vmem [#allocation9], %s598
        %p600 = pneg %p159
        %p601 = pneg %p156
        %s602 = sand.u32 %s48, 1
        %s603 = scalar_lea.sflag [#allocation11], %s602
        %s604 = sand.u32 %s174, 1
        %s605 = smul.addr %s604, 192
        %s606 = scalar_lea.vmem [#allocation10], %s605
        %p607 = pneg %p187
        %p608 = pneg %p184
        %s609 = sand.u32 %s48, 1
        %s610 = scalar_lea.sflag [#allocation11], %s609
        %s611 = sand.u32 %s202, 1
        %s612 = smul.addr %s611, 192
        %s613 = scalar_lea.vmem [#allocation12], %s612
        %p614 = pneg %p215
        %p615 = pneg %p212
        %s616 = sand.u32 %s48, 1
        %s617 = scalar_lea.sflag [#allocation14], %s616
        %s618 = sand.u32 %s230, 1
        %s619 = smul.addr %s618, 64
        %s620 = scalar_lea.vmem [#allocation13], %s619
        %p621 = pneg %p243
        %p622 = pneg %p240
        %s623 = sand.u32 %s48, 1
        %s624 = scalar_lea.sflag [#allocation14], %s623
        %s625 = sand.u32 %s258, 1
        %s626 = smul.addr %s625, 64
        %s627 = scalar_lea.vmem [#allocation15], %s626
        %p628 = pneg %p271
        %p629 = pneg %p268
        %p630 = pneg %p297
        %p631 = pneg %p294
        %s632 = sand.u32 %s284, 1
        %s633 = scalar_lea.sflag [#allocation6], %s632
        %s634 = sand.u32 %s284, 1
        %s635 = smul.addr %s634, 24
        %s636 = scalar_lea.vmem [#allocation16], %s635
        %p637 = pneg %p323
        %p638 = pneg %p320
        %s639 = sand.u32 %s310, 1
        %s640 = scalar_lea.sflag [#allocation18], %s639
        %s641 = sand.u32 %s310, 1
        %s642 = smul.addr %s641, 40
        %s643 = scalar_lea.vmem [#allocation17], %s642
        %p644 = scmp.lt.s32.totalorder %s52, 1
        %s645 = scalar_select %p644, %s52, 1
        %s646 = scalar_lea.vmem %s3, %s645
        %s647 = sld [smem:[#allocation3 + %s53]]
        %s648 = sld [smem:[#allocation3 + %s53]]
        %s649 = sld [smem:[#allocation3 + %s53]]
        %s650 = sld [smem:[#allocation3 + %s53]]
        %p652 = scmp.eq.s32.totalorder %s53, 0
        // Predicated region
        $region81: #{tpu_custom_call.1} parent=51 // pred_check
          %p653 = pneg %p652
        $region82: #{tpu_custom_call.1} parent=51 // pred_check_branch
          %655 = sbr.rel (%p653) target = $region84
        $region83: #{tpu_custom_call.1} parent=51 // pred_region
          %v656 = vld [vmem:[%s512] sm:$0xff]
          %v657 = vld [vmem:[%s512 + $0x8] sm:$0xff]
          %v658 = vld [vmem:[%s512 + $0x10] sm:$0xff]
          %659 = vst [vmem:[%s636] sm:$0xff] %v656
          %660 = vst [vmem:[%s636 + $0x8] sm:$0xff] %v657
          %661 = vst [vmem:[%s636 + $0x10] sm:$0xff] %v658
          %v662 = vld [vmem:[%s522] sm:$0xff]
          %v663 = vld [vmem:[%s522 + $0x8] sm:$0xff]
          %v664 = vld [vmem:[%s522 + $0x10] sm:$0xff]
          %v665 = vld [vmem:[%s522 + $0x18] sm:$0xff]
          %v666 = vld [vmem:[%s522 + $0x20] sm:$0xff]
          %667 = vst [vmem:[%s643] sm:$0xff] %v662
          %668 = vst [vmem:[%s643 + $0x8] sm:$0xff] %v663
          %669 = vst [vmem:[%s643 + $0x10] sm:$0xff] %v664
          %670 = vst [vmem:[%s643 + $0x18] sm:$0xff] %v665
          %671 = vst [vmem:[%s643 + $0x20] sm:$0xff] %v666
        $region84: #{tpu_custom_call.1} parent=51 // pred_fallthru
          _
        %v672 = vld [vmem:[%s636] sm:$0xff]
        %v673 = vld [vmem:[%s636 + $0x8] sm:$0xff]
        %v674 = vld [vmem:[%s636 + $0x10] sm:$0xff]
        %v675 = vld [vmem:[%s643] sm:$0xff]
        %v676 = vld [vmem:[%s643 + $0x8] sm:$0xff]
        %v677 = vld [vmem:[%s643 + $0x10] sm:$0xff]
        %v678 = vld [vmem:[%s643 + $0x18] sm:$0xff]
        %v679 = vld [vmem:[%s643 + $0x20] sm:$0xff]
        %v680 = vpack.c.bf16 %v673, %v672
        %v681 = vpack.c.bf16 %v674, %v674
        %v682 = vld [vmem:[%s541] sm:$0xff]
        %v683 = vld [vmem:[%s541 + $0x8] sm:$0xf]
        %v684 = vld [vmem:[%s541 + $0xc] sm:$0xff]
        %v685 = vld [vmem:[%s541 + $0x14] sm:$0xf]
        %v686 = vld [vmem:[%s541 + $0x18] sm:$0xff]
        %v687 = vld [vmem:[%s541 + $0x20] sm:$0xf]
        %v688 = vld [vmem:[%s541 + $0x24] sm:$0xff]
        %v689 = vld [vmem:[%s541 + $0x2c] sm:$0xf]
        %v690 = vld [vmem:[%s541 + $0x30] sm:$0xff]
        %v691 = vld [vmem:[%s541 + $0x38] sm:$0xf]
        %v692 = vld [vmem:[%s541 + $0x3c] sm:$0xff]
        %v693 = vld [vmem:[%s541 + $0x44] sm:$0xf]
        %v694 = vld [vmem:[%s541 + $0x48] sm:$0xff]
        %v695 = vld [vmem:[%s541 + $0x50] sm:$0xf]
        %v696 = vld [vmem:[%s541 + $0x54] sm:$0xff]
        %v697 = vld [vmem:[%s541 + $0x5c] sm:$0xf]
        %v698 = vld [vmem:[%s541 + $0x60] sm:$0xff]
        %v699 = vld [vmem:[%s541 + $0x68] sm:$0xf]
        %v700 = vld [vmem:[%s541 + $0x6c] sm:$0xff]
        %v701 = vld [vmem:[%s541 + $0x74] sm:$0xf]
        %v702 = vld [vmem:[%s541 + $0x78] sm:$0xff]
        %v703 = vld [vmem:[%s541 + $0x80] sm:$0xf]
        %v704 = vld [vmem:[%s541 + $0x84] sm:$0xff]
        %v705 = vld [vmem:[%s541 + $0x8c] sm:$0xf]
        %v706 = vld [vmem:[%s541 + $0x90] sm:$0xff]
        %v707 = vld [vmem:[%s541 + $0x98] sm:$0xf]
        %v708 = vld [vmem:[%s541 + $0x9c] sm:$0xff]
        %v709 = vld [vmem:[%s541 + $0xa4] sm:$0xf]
        %v710 = vld [vmem:[%s541 + $0xa8] sm:$0xff]
        %v711 = vld [vmem:[%s541 + $0xb0] sm:$0xf]
        %v712 = vld [vmem:[%s541 + $0xb4] sm:$0xff]
        %v713 = vld [vmem:[%s541 + $0xbc] sm:$0xf]
        %v746 = vunpack.c.l.b16 %v682
        %v747 = vunpack.c.h.b16 %v682
        %v748 = vunpack.c.l.b16 %v683
        %v749 = vunpack.c.l.b16 %v684
        %v750 = vunpack.c.h.b16 %v684
        %v751 = vunpack.c.l.b16 %v685
        %v752 = vunpack.c.l.b16 %v686
        %v753 = vunpack.c.h.b16 %v686
        %v754 = vunpack.c.l.b16 %v687
        %v755 = vunpack.c.l.b16 %v688
        %v756 = vunpack.c.h.b16 %v688
        %v757 = vunpack.c.l.b16 %v689
        %v758 = vunpack.c.l.b16 %v690
        %v759 = vunpack.c.h.b16 %v690
        %v760 = vunpack.c.l.b16 %v691
        %v761 = vunpack.c.l.b16 %v692
        %v762 = vunpack.c.h.b16 %v692
        %v763 = vunpack.c.l.b16 %v693
        %v764 = vunpack.c.l.b16 %v694
        %v765 = vunpack.c.h.b16 %v694
        %v766 = vunpack.c.l.b16 %v695
        %v767 = vunpack.c.l.b16 %v696
        %v768 = vunpack.c.h.b16 %v696
        %v769 = vunpack.c.l.b16 %v697
        %v770 = vunpack.c.l.b16 %v698
        %v771 = vunpack.c.h.b16 %v698
        %v772 = vunpack.c.l.b16 %v699
        %v773 = vunpack.c.l.b16 %v700
        %v774 = vunpack.c.h.b16 %v700
        %v775 = vunpack.c.l.b16 %v701
        %v776 = vunpack.c.l.b16 %v702
        %v777 = vunpack.c.h.b16 %v702
        %v778 = vunpack.c.l.b16 %v703
        %v779 = vunpack.c.l.b16 %v704
        %v780 = vunpack.c.h.b16 %v704
        %v781 = vunpack.c.l.b16 %v705
        %v782 = vunpack.c.l.b16 %v706
        %v783 = vunpack.c.h.b16 %v706
        %v784 = vunpack.c.l.b16 %v707
        %v785 = vunpack.c.l.b16 %v708
        %v786 = vunpack.c.h.b16 %v708
        %v787 = vunpack.c.l.b16 %v709
        %v788 = vunpack.c.l.b16 %v710
        %v789 = vunpack.c.h.b16 %v710
        %v790 = vunpack.c.l.b16 %v711
        %v791 = vunpack.c.l.b16 %v712
        %v792 = vunpack.c.h.b16 %v712
        %v793 = vunpack.c.l.b16 %v713
        %v794 = vpack.c.b16 %v749, %v746
        %v795 = vpack.c.b16 %v750, %v747
        %v796 = vpack.c.b16 %v751, %v748
        %v797 = vpack.c.b16 %v755, %v752
        %v798 = vpack.c.b16 %v756, %v753
        %v799 = vpack.c.b16 %v757, %v754
        %v800 = vpack.c.b16 %v761, %v758
        %v801 = vpack.c.b16 %v762, %v759
        %v802 = vpack.c.b16 %v763, %v760
        %v803 = vpack.c.b16 %v767, %v764
        %v804 = vpack.c.b16 %v768, %v765
        %v805 = vpack.c.b16 %v769, %v766
        %v806 = vpack.c.b16 %v773, %v770
        %v807 = vpack.c.b16 %v774, %v771
        %v808 = vpack.c.b16 %v775, %v772
        %v809 = vpack.c.b16 %v779, %v776
        %v810 = vpack.c.b16 %v780, %v777
        %v811 = vpack.c.b16 %v781, %v778
        %v812 = vpack.c.b16 %v785, %v782
        %v813 = vpack.c.b16 %v786, %v783
        %v814 = vpack.c.b16 %v787, %v784
        %v815 = vpack.c.b16 %v791, %v788
        %v816 = vpack.c.b16 %v792, %v789
        %v817 = vpack.c.b16 %v793, %v790
        %842 = vmatpush.bf16.msra.mxu0 %v815
        %843 = vmatpush.bf16.msra.mxu0 %v812
        %844 = vmatpush.bf16.msra.mxu0 %v809
        %845 = vmatpush.bf16.msra.mxu0 %v806
        %846 = vmatpush.bf16.msra.mxu0 %v803
        %847 = vmatpush.bf16.msra.mxu0 %v800
        %848 = vmatpush.bf16.msra.mxu0 %v797
        %849 = vmatpush.bf16.msra.mxu0 %v794
        %850 = vmatmul.bf16.gmra.mxu0 %v680
        %v851 = vpop.f32.mrf.mxu0
        %v852 = vadd.f32 0.0, %v851
        %v853 = vpop.f32.mrf.mxu0
        %v854 = vadd.f32 0.0, %v853
        %855 = vmatmul.bf16.gmra.mxu0 %v681
        %v856 = vpop.f32.mrf.mxu0
        %v857 = vadd.f32 0.0, %v856
        %v858 = vpop.f32.mrf.mxu0
        %859 = vdwg.mxu0
        %860 = vmatpush.bf16.msra.mxu0 %v816
        %861 = vmatpush.bf16.msra.mxu0 %v813
        %862 = vmatpush.bf16.msra.mxu0 %v810
        %863 = vmatpush.bf16.msra.mxu0 %v807
        %864 = vmatpush.bf16.msra.mxu0 %v804
        %865 = vmatpush.bf16.msra.mxu0 %v801
        %866 = vmatpush.bf16.msra.mxu0 %v798
        %867 = vmatpush.bf16.msra.mxu0 %v795
        %868 = vmatmul.bf16.gmra.mxu0 %v680
        %v869 = vpop.f32.mrf.mxu0
        %v870 = vadd.f32 0.0, %v869
        %v871 = vpop.f32.mrf.mxu0
        %v872 = vadd.f32 0.0, %v871
        %873 = vmatmul.bf16.gmra.mxu0 %v681
        %v874 = vpop.f32.mrf.mxu0
        %v875 = vadd.f32 0.0, %v874
        %v876 = vpop.f32.mrf.mxu0
        %877 = vdwg.mxu0
        %878 = vmatpush.bf16.msra.mxu0 %v817
        %879 = vmatpush.bf16.msra.mxu0 %v814
        %880 = vmatpush.bf16.msra.mxu0 %v811
        %881 = vmatpush.bf16.msra.mxu0 %v808
        %882 = vmatpush.bf16.msra.mxu0 %v805
        %883 = vmatpush.bf16.msra.mxu0 %v802
        %884 = vmatpush.bf16.msra.mxu0 %v799
        %885 = vmatpush.bf16.msra.mxu0 %v796
        %886 = vmatmul.bf16.gmra.mxu0 %v680
        %v887 = vpop.f32.mrf.mxu0
        %v888 = vadd.f32 0.0, %v887
        %v889 = vpop.f32.mrf.mxu0
        %v890 = vadd.f32 0.0, %v889
        %891 = vmatmul.bf16.gmra.mxu0 %v681
        %v892 = vpop.f32.mrf.mxu0
        %v893 = vadd.f32 0.0, %v892
        %v894 = vpop.f32.mrf.mxu0
        %895 = vdwg.mxu0
        %v896 = vpack.c.bf16 %v870, %v852
        %v897 = vpack.c.bf16 %v888, %v888
        %v898 = vpack.c.bf16 %v872, %v854
        %v899 = vpack.c.bf16 %v890, %v890
        %v900 = vpack.c.bf16 %v875, %v857
        %v901 = vpack.c.bf16 %v893, %v893
        %v902 = vpack.c.bf16 %v676, %v675
        %v903 = vpack.c.bf16 %v678, %v677
        %v904 = vpack.c.bf16 %v679, %v679
        %v905 = vld [vmem:[%s551] sm:$0xff]
        %v906 = vld [vmem:[%s551 + $0x8] sm:$0xf]
        %v907 = vld [vmem:[%s551 + $0xc] sm:$0xff]
        %v908 = vld [vmem:[%s551 + $0x14] sm:$0xf]
        %v909 = vld [vmem:[%s551 + $0x18] sm:$0xff]
        %v910 = vld [vmem:[%s551 + $0x20] sm:$0xf]
        %v911 = vld [vmem:[%s551 + $0x24] sm:$0xff]
        %v912 = vld [vmem:[%s551 + $0x2c] sm:$0xf]
        %v913 = vld [vmem:[%s551 + $0x30] sm:$0xff]
        %v914 = vld [vmem:[%s551 + $0x38] sm:$0xf]
        %v915 = vld [vmem:[%s551 + $0x3c] sm:$0xff]
        %v916 = vld [vmem:[%s551 + $0x44] sm:$0xf]
        %v917 = vld [vmem:[%s551 + $0x48] sm:$0xff]
        %v918 = vld [vmem:[%s551 + $0x50] sm:$0xf]
        %v919 = vld [vmem:[%s551 + $0x54] sm:$0xff]
        %v920 = vld [vmem:[%s551 + $0x5c] sm:$0xf]
        %v921 = vld [vmem:[%s551 + $0x60] sm:$0xff]
        %v922 = vld [vmem:[%s551 + $0x68] sm:$0xf]
        %v923 = vld [vmem:[%s551 + $0x6c] sm:$0xff]
        %v924 = vld [vmem:[%s551 + $0x74] sm:$0xf]
        %v925 = vld [vmem:[%s551 + $0x78] sm:$0xff]
        %v926 = vld [vmem:[%s551 + $0x80] sm:$0xf]
        %v927 = vld [vmem:[%s551 + $0x84] sm:$0xff]
        %v928 = vld [vmem:[%s551 + $0x8c] sm:$0xf]
        %v929 = vld [vmem:[%s551 + $0x90] sm:$0xff]
        %v930 = vld [vmem:[%s551 + $0x98] sm:$0xf]
        %v931 = vld [vmem:[%s551 + $0x9c] sm:$0xff]
        %v932 = vld [vmem:[%s551 + $0xa4] sm:$0xf]
        %v933 = vld [vmem:[%s551 + $0xa8] sm:$0xff]
        %v934 = vld [vmem:[%s551 + $0xb0] sm:$0xf]
        %v935 = vld [vmem:[%s551 + $0xb4] sm:$0xff]
        %v936 = vld [vmem:[%s551 + $0xbc] sm:$0xf]
        %v969 = vunpack.c.l.b16 %v905
        %v970 = vunpack.c.h.b16 %v905
        %v971 = vunpack.c.l.b16 %v906
        %v972 = vunpack.c.l.b16 %v907
        %v973 = vunpack.c.h.b16 %v907
        %v974 = vunpack.c.l.b16 %v908
        %v975 = vunpack.c.l.b16 %v909
        %v976 = vunpack.c.h.b16 %v909
        %v977 = vunpack.c.l.b16 %v910
        %v978 = vunpack.c.l.b16 %v911
        %v979 = vunpack.c.h.b16 %v911
        %v980 = vunpack.c.l.b16 %v912
        %v981 = vunpack.c.l.b16 %v913
        %v982 = vunpack.c.h.b16 %v913
        %v983 = vunpack.c.l.b16 %v914
        %v984 = vunpack.c.l.b16 %v915
        %v985 = vunpack.c.h.b16 %v915
        %v986 = vunpack.c.l.b16 %v916
        %v987 = vunpack.c.l.b16 %v917
        %v988 = vunpack.c.h.b16 %v917
        %v989 = vunpack.c.l.b16 %v918
        %v990 = vunpack.c.l.b16 %v919
        %v991 = vunpack.c.h.b16 %v919
        %v992 = vunpack.c.l.b16 %v920
        %v993 = vunpack.c.l.b16 %v921
        %v994 = vunpack.c.h.b16 %v921
        %v995 = vunpack.c.l.b16 %v922
        %v996 = vunpack.c.l.b16 %v923
        %v997 = vunpack.c.h.b16 %v923
        %v998 = vunpack.c.l.b16 %v924
        %v999 = vunpack.c.l.b16 %v925
        %v1000 = vunpack.c.h.b16 %v925
        %v1001 = vunpack.c.l.b16 %v926
        %v1002 = vunpack.c.l.b16 %v927
        %v1003 = vunpack.c.h.b16 %v927
        %v1004 = vunpack.c.l.b16 %v928
        %v1005 = vunpack.c.l.b16 %v929
        %v1006 = vunpack.c.h.b16 %v929
        %v1007 = vunpack.c.l.b16 %v930
        %v1008 = vunpack.c.l.b16 %v931
        %v1009 = vunpack.c.h.b16 %v931
        %v1010 = vunpack.c.l.b16 %v932
        %v1011 = vunpack.c.l.b16 %v933
        %v1012 = vunpack.c.h.b16 %v933
        %v1013 = vunpack.c.l.b16 %v934
        %v1014 = vunpack.c.l.b16 %v935
        %v1015 = vunpack.c.h.b16 %v935
        %v1016 = vunpack.c.l.b16 %v936
        %v1017 = vpack.c.b16 %v972, %v969
        %v1018 = vpack.c.b16 %v973, %v970
        %v1019 = vpack.c.b16 %v974, %v971
        %v1020 = vpack.c.b16 %v978, %v975
        %v1021 = vpack.c.b16 %v979, %v976
        %v1022 = vpack.c.b16 %v980, %v977
        %v1023 = vpack.c.b16 %v984, %v981
        %v1024 = vpack.c.b16 %v985, %v982
        %v1025 = vpack.c.b16 %v986, %v983
        %v1026 = vpack.c.b16 %v990, %v987
        %v1027 = vpack.c.b16 %v991, %v988
        %v1028 = vpack.c.b16 %v992, %v989
        %v1029 = vpack.c.b16 %v996, %v993
        %v1030 = vpack.c.b16 %v997, %v994
        %v1031 = vpack.c.b16 %v998, %v995
        %v1032 = vpack.c.b16 %v1002, %v999
        %v1033 = vpack.c.b16 %v1003, %v1000
        %v1034 = vpack.c.b16 %v1004, %v1001
        %v1035 = vpack.c.b16 %v1008, %v1005
        %v1036 = vpack.c.b16 %v1009, %v1006
        %v1037 = vpack.c.b16 %v1010, %v1007
        %v1038 = vpack.c.b16 %v1014, %v1011
        %v1039 = vpack.c.b16 %v1015, %v1012
        %v1040 = vpack.c.b16 %v1016, %v1013
        %1065 = vmatpush.bf16.msra.mxu0 %v1038
        %1066 = vmatpush.bf16.msra.mxu0 %v1035
        %1067 = vmatpush.bf16.msra.mxu0 %v1032
        %1068 = vmatpush.bf16.msra.mxu0 %v1029
        %1069 = vmatpush.bf16.msra.mxu0 %v1026
        %1070 = vmatpush.bf16.msra.mxu0 %v1023
        %1071 = vmatpush.bf16.msra.mxu0 %v1020
        %1072 = vmatpush.bf16.msra.mxu0 %v1017
        %1073 = vmatmul.bf16.gmra.mxu0 %v902
        %v1074 = vpop.f32.mrf.mxu0
        %v1075 = vadd.f32 0.0, %v1074
        %v1076 = vpop.f32.mrf.mxu0
        %v1077 = vadd.f32 0.0, %v1076
        %1078 = vmatmul.bf16.gmra.mxu0 %v903
        %v1079 = vpop.f32.mrf.mxu0
        %v1080 = vadd.f32 0.0, %v1079
        %v1081 = vpop.f32.mrf.mxu0
        %v1082 = vadd.f32 0.0, %v1081
        %1083 = vmatmul.bf16.gmra.mxu0 %v904
        %v1084 = vpop.f32.mrf.mxu0
        %v1085 = vadd.f32 0.0, %v1084
        %v1086 = vpop.f32.mrf.mxu0
        %1087 = vdwg.mxu0
        %1088 = vmatpush.bf16.msra.mxu0 %v1039
        %1089 = vmatpush.bf16.msra.mxu0 %v1036
        %1090 = vmatpush.bf16.msra.mxu0 %v1033
        %1091 = vmatpush.bf16.msra.mxu0 %v1030
        %1092 = vmatpush.bf16.msra.mxu0 %v1027
        %1093 = vmatpush.bf16.msra.mxu0 %v1024
        %1094 = vmatpush.bf16.msra.mxu0 %v1021
        %1095 = vmatpush.bf16.msra.mxu0 %v1018
        %1096 = vmatmul.bf16.gmra.mxu0 %v902
        %v1097 = vpop.f32.mrf.mxu0
        %v1098 = vadd.f32 0.0, %v1097
        %v1099 = vpop.f32.mrf.mxu0
        %v1100 = vadd.f32 0.0, %v1099
        %1101 = vmatmul.bf16.gmra.mxu0 %v903
        %v1102 = vpop.f32.mrf.mxu0
        %v1103 = vadd.f32 0.0, %v1102
        %v1104 = vpop.f32.mrf.mxu0
        %v1105 = vadd.f32 0.0, %v1104
        %1106 = vmatmul.bf16.gmra.mxu0 %v904
        %v1107 = vpop.f32.mrf.mxu0
        %v1108 = vadd.f32 0.0, %v1107
        %v1109 = vpop.f32.mrf.mxu0
        %1110 = vdwg.mxu0
        %1111 = vmatpush.bf16.msra.mxu0 %v1040
        %1112 = vmatpush.bf16.msra.mxu0 %v1037
        %1113 = vmatpush.bf16.msra.mxu0 %v1034
        %1114 = vmatpush.bf16.msra.mxu0 %v1031
        %1115 = vmatpush.bf16.msra.mxu0 %v1028
        %1116 = vmatpush.bf16.msra.mxu0 %v1025
        %1117 = vmatpush.bf16.msra.mxu0 %v1022
        %1118 = vmatpush.bf16.msra.mxu0 %v1019
        %1119 = vmatmul.bf16.gmra.mxu0 %v902
        %v1120 = vpop.f32.mrf.mxu0
        %v1121 = vadd.f32 0.0, %v1120
        %v1122 = vpop.f32.mrf.mxu0
        %v1123 = vadd.f32 0.0, %v1122
        %1124 = vmatmul.bf16.gmra.mxu0 %v903
        %v1125 = vpop.f32.mrf.mxu0
        %v1126 = vadd.f32 0.0, %v1125
        %v1127 = vpop.f32.mrf.mxu0
        %v1128 = vadd.f32 0.0, %v1127
        %1129 = vmatmul.bf16.gmra.mxu0 %v904
        %v1130 = vpop.f32.mrf.mxu0
        %v1131 = vadd.f32 0.0, %v1130
        %v1132 = vpop.f32.mrf.mxu0
        %1133 = vdwg.mxu0
        %v1134 = vpack.c.bf16 %v1098, %v1075
        %v1135 = vpack.c.bf16 %v1121, %v1121
        %v1136 = vpack.c.bf16 %v1100, %v1077
        %v1137 = vpack.c.bf16 %v1123, %v1123
        %v1138 = vpack.c.bf16 %v1103, %v1080
        %v1139 = vpack.c.bf16 %v1126, %v1126
        %v1140 = vpack.c.bf16 %v1105, %v1082
        %v1141 = vpack.c.bf16 %v1128, %v1128
        %v1142 = vpack.c.bf16 %v1108, %v1085
        %v1143 = vpack.c.bf16 %v1131, %v1131
        %v1144 = vld [vmem:[%s531] sm:$0x1]
        %v1145 = vld [vmem:[%s561] sm:$0xf]
        %v1146 = vld [vmem:[%s561 + $0x4] sm:$0xf]
        %v1147 = vld [vmem:[%s561 + $0x8] sm:$0xf]
        %v1148 = vld [vmem:[%s561 + $0xc] sm:$0xf]
        %v1149 = vld [vmem:[%s561 + $0x10] sm:$0xf]
        %v1150 = vld [vmem:[%s561 + $0x14] sm:$0xf]
        %v1151 = vld [vmem:[%s561 + $0x18] sm:$0xf]
        %v1152 = vld [vmem:[%s561 + $0x1c] sm:$0xf]
        %v1153 = vld [vmem:[%s561 + $0x20] sm:$0xf]
        %v1154 = vld [vmem:[%s561 + $0x24] sm:$0xf]
        %v1155 = vld [vmem:[%s561 + $0x28] sm:$0xf]
        %v1156 = vld [vmem:[%s561 + $0x2c] sm:$0xf]
        %v1157 = vld [vmem:[%s561 + $0x30] sm:$0xf]
        %v1158 = vld [vmem:[%s561 + $0x34] sm:$0xf]
        %v1159 = vld [vmem:[%s561 + $0x38] sm:$0xf]
        %v1160 = vld [vmem:[%s561 + $0x3c] sm:$0xf]
        %v1162 = vperm.slane %v1144, 0
        %v1169 = vrot.slane %v1134, 4
        %v1170 = vrot.slane %v1136, 4
        %v1171 = vrot.slane %v1138, 4
        %v1172 = vrot.slane %v1140, 4
        %v1173 = vrot.slane %v1142, 4
        %v1177 = vunpack.c.l.b16 %v896
        %v1178 = vunpack.c.l.b16 %v898
        %v1179 = vunpack.c.l.b16 %v900
        %v1180 = vpack.c.b16 %v1178, %v1177
        %v1181 = vpack.c.b16 %v1179, %v1179
        %v1184 = vunpack.c.l.b16 %v1169
        %v1185 = vunpack.c.l.b16 %v1170
        %v1186 = vunpack.c.l.b16 %v1171
        %v1187 = vunpack.c.l.b16 %v1172
        %v1188 = vunpack.c.l.b16 %v1173
        %v1189 = vpack.c.b16 %v1185, %v1184
        %v1190 = vpack.c.b16 %v1187, %v1186
        %v1191 = vpack.c.b16 %v1188, %v1188
        %1195 = vmatpush.bf16.xpose.msra.mxu0 0
        %1196 = vmatpush.bf16.xpose.msra.mxu0 0
        %1197 = vmatpush.bf16.xpose.msra.mxu0 0
        %1198 = vmatpush.bf16.xpose.msra.mxu0 0
        %1199 = vmatpush.bf16.xpose.msra.mxu0 0
        %1200 = vmatpush.bf16.xpose.msra.mxu0 %v1191
        %1201 = vmatpush.bf16.xpose.msra.mxu0 %v1190
        %1202 = vmatpush.bf16.xpose.msra.mxu0 %v1189
        %1203 = vmatmul.bf16.gmra.mxu0 %v1180
        %v1204 = vpop.f32.mrf.mxu0
        %v1205 = vadd.f32 %v1162, %v1204
        %v1206 = vpop.f32.mrf.mxu0
        %v1207 = vadd.f32 %v1162, %v1206
        %1208 = vmatmul.bf16.gmra.mxu0 %v1181
        %v1209 = vpop.f32.mrf.mxu0
        %v1210 = vadd.f32 %v1162, %v1209
        %v1211 = vpop.f32.mrf.mxu0
        %1212 = vdwg.mxu0
        %vm1213 = vcmask 326656
        %v1214 = vsel %vm1213, %v1205, -inf
        %1215 = vmax.xlane.f32.xlu0 %v1214
        %v1216 = vpop.xlane.xlu0 %1215
        %v1217 = vsel %vm1213, %v1207, -inf
        %1218 = vmax.xlane.f32.xlu0 %v1217
        %v1219 = vpop.xlane.xlu0 %1218
        %v1220 = vsel %vm1213, %v1210, -inf
        %1221 = vmax.xlane.f32.xlu0 %v1220
        %v1222 = vpop.xlane.xlu0 %1221
        %v1223 = vsub.f32 %v1205, %v1216
        %v1224 = vsub.f32 %v1207, %v1219
        %v1225 = vsub.f32 %v1210, %v1222
        %v1226 = vmul.f32 %v1223, 1.442695
        %v1227 = vpow.pop %v1226
        %v1228 = vmul.f32 %v1224, 1.442695
        %v1229 = vpow.pop %v1228
        %v1230 = vmul.f32 %v1225, 1.442695
        %v1231 = vpow.pop %v1230
        %v1232 = vsel %vm1213, %v1227, 0.0
        %1233 = vadd.xlane.f32.xlu0 %v1232
        %v1234 = vpop.xlane.xlu0 %1233
        %v1235 = vsel %vm1213, %v1229, 0.0
        %1236 = vadd.xlane.f32.xlu0 %v1235
        %v1237 = vpop.xlane.xlu0 %1236
        %v1238 = vsel %vm1213, %v1231, 0.0
        %1239 = vadd.xlane.f32.xlu0 %v1238
        %v1240 = vpop.xlane.xlu0 %1239
        %v1241 = vrcp.pop %v1234
        %v1242 = vrcp.pop %v1237
        %v1243 = vrcp.pop %v1240
        %v1244 = vmul.f32 %v1227, %v1241
        %v1245 = vmul.f32 %v1229, %v1242
        %v1246 = vmul.f32 %v1231, %v1243
        %v1247 = vpack.c.bf16 %v1244, %v1244
        %v1248 = vpack.c.bf16 %v1245, %v1245
        %v1249 = vpack.c.bf16 %v1246, %v1246
        %v1253 = vunpack.c.l.b16 %v1247
        %v1254 = vunpack.c.l.b16 %v1248
        %v1255 = vunpack.c.l.b16 %v1249
        %v1256 = vpack.c.b16 %v1254, %v1253
        %v1257 = vpack.c.b16 %v1255, %v1255
        %v1263 = vunpack.c.l.b16 %v1135
        %v1264 = vunpack.c.l.b16 %v1137
        %v1265 = vunpack.c.l.b16 %v1139
        %v1266 = vunpack.c.l.b16 %v1141
        %v1267 = vunpack.c.l.b16 %v1143
        %v1268 = vpack.c.b16 %v1264, %v1263
        %v1269 = vpack.c.b16 %v1266, %v1265
        %v1270 = vpack.c.b16 %v1267, %v1267
        %v1274 = vsel %vm1213, %v1256, 0
        %v1277 = vsel %vm1213, %v1257, 0
        %vm1279 = vcmask 1043456
        %v1281 = vsel %vm1279, %v1270, 0
        %1283 = vmatpush.bf16.msra.mxu0 0
        %1284 = vmatpush.bf16.msra.mxu0 0
        %1285 = vmatpush.bf16.msra.mxu0 0
        %1286 = vmatpush.bf16.msra.mxu0 0
        %1287 = vmatpush.bf16.msra.mxu0 0
        %1288 = vmatpush.bf16.msra.mxu0 %v1281
        %1289 = vmatpush.bf16.msra.mxu0 %v1269
        %1290 = vmatpush.bf16.msra.mxu0 %v1268
        %1291 = vmatmul.bf16.gmra.mxu0 %v1274
        %v1292 = vpop.f32.mrf.mxu0
        %v1293 = vadd.f32 0.0, %v1292
        %v1294 = vpop.f32.mrf.mxu0
        %v1295 = vadd.f32 0.0, %v1294
        %1296 = vmatmul.bf16.gmra.mxu0 %v1277
        %v1297 = vpop.f32.mrf.mxu0
        %v1298 = vadd.f32 0.0, %v1297
        %v1299 = vpop.f32.mrf.mxu0
        %1300 = vdwg.mxu0
        %v1301 = vpack.c.bf16 %v1295, %v1293
        %v1302 = vpack.c.bf16 %v1298, %v1298
        %v1319 = vunpack.c.l.b16 %v1145
        %v1320 = vunpack.c.l.b16 %v1146
        %v1321 = vunpack.c.l.b16 %v1147
        %v1322 = vunpack.c.l.b16 %v1148
        %v1323 = vunpack.c.l.b16 %v1149
        %v1324 = vunpack.c.l.b16 %v1150
        %v1325 = vunpack.c.l.b16 %v1151
        %v1326 = vunpack.c.l.b16 %v1152
        %v1327 = vunpack.c.l.b16 %v1153
        %v1328 = vunpack.c.l.b16 %v1154
        %v1329 = vunpack.c.l.b16 %v1155
        %v1330 = vunpack.c.l.b16 %v1156
        %v1331 = vunpack.c.l.b16 %v1157
        %v1332 = vunpack.c.l.b16 %v1158
        %v1333 = vunpack.c.l.b16 %v1159
        %v1334 = vunpack.c.l.b16 %v1160
        %v1335 = vpack.c.b16 %v1320, %v1319
        %v1336 = vpack.c.b16 %v1322, %v1321
        %v1337 = vpack.c.b16 %v1324, %v1323
        %v1338 = vpack.c.b16 %v1326, %v1325
        %v1339 = vpack.c.b16 %v1328, %v1327
        %v1340 = vpack.c.b16 %v1330, %v1329
        %v1341 = vpack.c.b16 %v1332, %v1331
        %v1342 = vpack.c.b16 %v1334, %v1333
        %1351 = vmatpush.bf16.msra.mxu0 %v1342
        %1352 = vmatpush.bf16.msra.mxu0 %v1341
        %1353 = vmatpush.bf16.msra.mxu0 %v1340
        %1354 = vmatpush.bf16.msra.mxu0 %v1339
        %1355 = vmatpush.bf16.msra.mxu0 %v1338
        %1356 = vmatpush.bf16.msra.mxu0 %v1337
        %1357 = vmatpush.bf16.msra.mxu0 %v1336
        %1358 = vmatpush.bf16.msra.mxu0 %v1335
        %1359 = vmatmul.bf16.gmra.mxu0 %v1301
        %v1360 = vpop.f32.mrf.mxu0
        %v1361 = vadd.f32 0.0, %v1360
        %v1362 = vpop.f32.mrf.mxu0
        %v1363 = vadd.f32 0.0, %v1362
        %1364 = vmatmul.bf16.gmra.mxu0 %v1302
        %v1365 = vpop.f32.mrf.mxu0
        %v1366 = vadd.f32 0.0, %v1365
        %v1367 = vpop.f32.mrf.mxu0
        %1368 = vdwg.mxu0
        %v1369 = vadd.f32 %v672, %v1361
        %v1370 = vadd.f32 %v673, %v1363
        %v1371 = vadd.f32 %v674, %v1366
        %v1372 = vld [vmem:[%s646] sm:$0x1]
        %v1373 = vld [vmem:[%s571] sm:$0xf]
        %v1374 = vld [vmem:[%s571 + $0x4] sm:$0xf]
        %v1375 = vld [vmem:[%s571 + $0x8] sm:$0xf]
        %v1376 = vld [vmem:[%s571 + $0xc] sm:$0xf]
        %v1377 = vld [vmem:[%s571 + $0x10] sm:$0xf]
        %v1378 = vld [vmem:[%s571 + $0x14] sm:$0xf]
        %v1379 = vld [vmem:[%s571 + $0x18] sm:$0xf]
        %v1380 = vld [vmem:[%s571 + $0x1c] sm:$0xf]
        %v1381 = vld [vmem:[%s571 + $0x20] sm:$0xf]
        %v1382 = vld [vmem:[%s571 + $0x24] sm:$0xf]
        %v1383 = vld [vmem:[%s571 + $0x28] sm:$0xf]
        %v1384 = vld [vmem:[%s571 + $0x2c] sm:$0xf]
        %v1385 = vld [vmem:[%s571 + $0x30] sm:$0xf]
        %v1386 = vld [vmem:[%s571 + $0x34] sm:$0xf]
        %v1387 = vld [vmem:[%s571 + $0x38] sm:$0xf]
        %v1388 = vld [vmem:[%s571 + $0x3c] sm:$0xf]
        %v1390 = vperm.slane %v1372, 0
        %v1392 = vrot.slane %v896, 4
        %v1393 = vrot.slane %v898, 4
        %v1394 = vrot.slane %v900, 4
        %v1395 = vunpack.c.l.b16 %v1134
        %v1396 = vunpack.c.l.b16 %v1136
        %v1397 = vunpack.c.l.b16 %v1138
        %v1398 = vunpack.c.l.b16 %v1140
        %v1399 = vunpack.c.l.b16 %v1142
        %v1400 = vpack.c.b16 %v1396, %v1395
        %v1401 = vpack.c.b16 %v1398, %v1397
        %v1402 = vpack.c.b16 %v1399, %v1399
        %v1406 = vunpack.c.l.b16 %v1392
        %v1407 = vunpack.c.l.b16 %v1393
        %v1408 = vunpack.c.l.b16 %v1394
        %v1409 = vpack.c.b16 %v1407, %v1406
        %v1410 = vpack.c.b16 %v1408, %v1408
        %1413 = vmatpush.bf16.xpose.msra.mxu0 0
        %1414 = vmatpush.bf16.xpose.msra.mxu0 0
        %1415 = vmatpush.bf16.xpose.msra.mxu0 0
        %1416 = vmatpush.bf16.xpose.msra.mxu0 0
        %1417 = vmatpush.bf16.xpose.msra.mxu0 0
        %1418 = vmatpush.bf16.xpose.msra.mxu0 0
        %1419 = vmatpush.bf16.xpose.msra.mxu0 %v1410
        %1420 = vmatpush.bf16.xpose.msra.mxu0 %v1409
        %1421 = vmatmul.bf16.gmra.mxu0 %v1400
        %v1422 = vpop.f32.mrf.mxu0
        %v1423 = vadd.f32 %v1390, %v1422
        %v1424 = vpop.f32.mrf.mxu0
        %v1425 = vadd.f32 %v1390, %v1424
        %1426 = vmatmul.bf16.gmra.mxu0 %v1401
        %v1427 = vpop.f32.mrf.mxu0
        %v1428 = vadd.f32 %v1390, %v1427
        %v1429 = vpop.f32.mrf.mxu0
        %v1430 = vadd.f32 %v1390, %v1429
        %1431 = vmatmul.bf16.gmra.mxu0 %v1402
        %v1432 = vpop.f32.mrf.mxu0
        %v1433 = vadd.f32 %v1390, %v1432
        %v1434 = vpop.f32.mrf.mxu0
        %1435 = vdwg.mxu0
        %vm1436 = vcmask 195584
        %v1437 = vsel %vm1436, %v1423, -inf
        %1438 = vmax.xlane.f32.xlu0 %v1437
        %v1439 = vpop.xlane.xlu0 %1438
        %v1440 = vsel %vm1436, %v1425, -inf
        %1441 = vmax.xlane.f32.xlu0 %v1440
        %v1442 = vpop.xlane.xlu0 %1441
        %v1443 = vsel %vm1436, %v1428, -inf
        %1444 = vmax.xlane.f32.xlu0 %v1443
        %v1445 = vpop.xlane.xlu0 %1444
        %v1446 = vsel %vm1436, %v1430, -inf
        %1447 = vmax.xlane.f32.xlu0 %v1446
        %v1448 = vpop.xlane.xlu0 %1447
        %v1449 = vsel %vm1436, %v1433, -inf
        %1450 = vmax.xlane.f32.xlu0 %v1449
        %v1451 = vpop.xlane.xlu0 %1450
        %v1452 = vsub.f32 %v1423, %v1439
        %v1453 = vsub.f32 %v1425, %v1442
        %v1454 = vsub.f32 %v1428, %v1445
        %v1455 = vsub.f32 %v1430, %v1448
        %v1456 = vsub.f32 %v1433, %v1451
        %v1457 = vmul.f32 %v1452, 1.442695
        %v1458 = vpow.pop %v1457
        %v1459 = vmul.f32 %v1453, 1.442695
        %v1460 = vpow.pop %v1459
        %v1461 = vmul.f32 %v1454, 1.442695
        %v1462 = vpow.pop %v1461
        %v1463 = vmul.f32 %v1455, 1.442695
        %v1464 = vpow.pop %v1463
        %v1465 = vmul.f32 %v1456, 1.442695
        %v1466 = vpow.pop %v1465
        %v1467 = vsel %vm1436, %v1458, 0.0
        %1468 = vadd.xlane.f32.xlu0 %v1467
        %v1469 = vpop.xlane.xlu0 %1468
        %v1470 = vsel %vm1436, %v1460, 0.0
        %1471 = vadd.xlane.f32.xlu0 %v1470
        %v1472 = vpop.xlane.xlu0 %1471
        %v1473 = vsel %vm1436, %v1462, 0.0
        %1474 = vadd.xlane.f32.xlu0 %v1473
        %v1475 = vpop.xlane.xlu0 %1474
        %v1476 = vsel %vm1436, %v1464, 0.0
        %1477 = vadd.xlane.f32.xlu0 %v1476
        %v1478 = vpop.xlane.xlu0 %1477
        %v1479 = vsel %vm1436, %v1466, 0.0
        %1480 = vadd.xlane.f32.xlu0 %v1479
        %v1481 = vpop.xlane.xlu0 %1480
        %v1482 = vrcp.pop %v1469
        %v1483 = vrcp.pop %v1472
        %v1484 = vrcp.pop %v1475
        %v1485 = vrcp.pop %v1478
        %v1486 = vrcp.pop %v1481
        %v1487 = vmul.f32 %v1458, %v1482
        %v1488 = vmul.f32 %v1460, %v1483
        %v1489 = vmul.f32 %v1462, %v1484
        %v1490 = vmul.f32 %v1464, %v1485
        %v1491 = vmul.f32 %v1466, %v1486
        %v1492 = vpack.c.bf16 %v1487, %v1487
        %v1493 = vpack.c.bf16 %v1488, %v1488
        %v1494 = vpack.c.bf16 %v1489, %v1489
        %v1495 = vpack.c.bf16 %v1490, %v1490
        %v1496 = vpack.c.bf16 %v1491, %v1491
        %v1502 = vunpack.c.l.b16 %v1492
        %v1503 = vunpack.c.l.b16 %v1493
        %v1504 = vunpack.c.l.b16 %v1494
        %v1505 = vunpack.c.l.b16 %v1495
        %v1506 = vunpack.c.l.b16 %v1496
        %v1507 = vpack.c.b16 %v1503, %v1502
        %v1508 = vpack.c.b16 %v1505, %v1504
        %v1509 = vpack.c.b16 %v1506, %v1506
        %v1513 = vunpack.c.l.b16 %v897
        %v1514 = vunpack.c.l.b16 %v899
        %v1515 = vunpack.c.l.b16 %v901
        %v1516 = vpack.c.b16 %v1514, %v1513
        %v1517 = vpack.c.b16 %v1515, %v1515
        %v1520 = vsel %vm1436, %v1507, 0
        %v1523 = vsel %vm1436, %v1508, 0
        %v1526 = vsel %vm1436, %v1509, 0
        %v1529 = vsel %vm1279, %v1517, 0
        %1531 = vmatpush.bf16.msra.mxu0 0
        %1532 = vmatpush.bf16.msra.mxu0 0
        %1533 = vmatpush.bf16.msra.mxu0 0
        %1534 = vmatpush.bf16.msra.mxu0 0
        %1535 = vmatpush.bf16.msra.mxu0 0
        %1536 = vmatpush.bf16.msra.mxu0 0
        %1537 = vmatpush.bf16.msra.mxu0 %v1529
        %1538 = vmatpush.bf16.msra.mxu0 %v1516
        %1539 = vmatmul.bf16.gmra.mxu0 %v1520
        %v1540 = vpop.f32.mrf.mxu0
        %v1541 = vadd.f32 0.0, %v1540
        %v1542 = vpop.f32.mrf.mxu0
        %v1543 = vadd.f32 0.0, %v1542
        %1544 = vmatmul.bf16.gmra.mxu0 %v1523
        %v1545 = vpop.f32.mrf.mxu0
        %v1546 = vadd.f32 0.0, %v1545
        %v1547 = vpop.f32.mrf.mxu0
        %v1548 = vadd.f32 0.0, %v1547
        %1549 = vmatmul.bf16.gmra.mxu0 %v1526
        %v1550 = vpop.f32.mrf.mxu0
        %v1551 = vadd.f32 0.0, %v1550
        %v1552 = vpop.f32.mrf.mxu0
        %1553 = vdwg.mxu0
        %v1554 = vpack.c.bf16 %v1543, %v1541
        %v1555 = vpack.c.bf16 %v1548, %v1546
        %v1556 = vpack.c.bf16 %v1551, %v1551
        %v1573 = vunpack.c.l.b16 %v1373
        %v1574 = vunpack.c.l.b16 %v1374
        %v1575 = vunpack.c.l.b16 %v1375
        %v1576 = vunpack.c.l.b16 %v1376
        %v1577 = vunpack.c.l.b16 %v1377
        %v1578 = vunpack.c.l.b16 %v1378
        %v1579 = vunpack.c.l.b16 %v1379
        %v1580 = vunpack.c.l.b16 %v1380
        %v1581 = vunpack.c.l.b16 %v1381
        %v1582 = vunpack.c.l.b16 %v1382
        %v1583 = vunpack.c.l.b16 %v1383
        %v1584 = vunpack.c.l.b16 %v1384
        %v1585 = vunpack.c.l.b16 %v1385
        %v1586 = vunpack.c.l.b16 %v1386
        %v1587 = vunpack.c.l.b16 %v1387
        %v1588 = vunpack.c.l.b16 %v1388
        %v1589 = vpack.c.b16 %v1574, %v1573
        %v1590 = vpack.c.b16 %v1576, %v1575
        %v1591 = vpack.c.b16 %v1578, %v1577
        %v1592 = vpack.c.b16 %v1580, %v1579
        %v1593 = vpack.c.b16 %v1582, %v1581
        %v1594 = vpack.c.b16 %v1584, %v1583
        %v1595 = vpack.c.b16 %v1586, %v1585
        %v1596 = vpack.c.b16 %v1588, %v1587
        %1605 = vmatpush.bf16.msra.mxu0 %v1596
        %1606 = vmatpush.bf16.msra.mxu0 %v1595
        %1607 = vmatpush.bf16.msra.mxu0 %v1594
        %1608 = vmatpush.bf16.msra.mxu0 %v1593
        %1609 = vmatpush.bf16.msra.mxu0 %v1592
        %1610 = vmatpush.bf16.msra.mxu0 %v1591
        %1611 = vmatpush.bf16.msra.mxu0 %v1590
        %1612 = vmatpush.bf16.msra.mxu0 %v1589
        %1613 = vmatmul.bf16.gmra.mxu0 %v1554
        %v1614 = vpop.f32.mrf.mxu0
        %v1615 = vadd.f32 0.0, %v1614
        %v1616 = vpop.f32.mrf.mxu0
        %v1617 = vadd.f32 0.0, %v1616
        %1618 = vmatmul.bf16.gmra.mxu0 %v1555
        %v1619 = vpop.f32.mrf.mxu0
        %v1620 = vadd.f32 0.0, %v1619
        %v1621 = vpop.f32.mrf.mxu0
        %v1622 = vadd.f32 0.0, %v1621
        %1623 = vmatmul.bf16.gmra.mxu0 %v1556
        %v1624 = vpop.f32.mrf.mxu0
        %v1625 = vadd.f32 0.0, %v1624
        %v1626 = vpop.f32.mrf.mxu0
        %1627 = vdwg.mxu0
        %v1628 = vadd.f32 %v675, %v1615
        %v1629 = vadd.f32 %v676, %v1617
        %v1630 = vadd.f32 %v677, %v1620
        %v1631 = vadd.f32 %v678, %v1622
        %v1632 = vadd.f32 %v679, %v1625
        %1633 = vst [vmem:[%s636] sm:$0xff] %v1369
        %1634 = vst [vmem:[%s636 + $0x8] sm:$0xff] %v1370
        %1635 = vst [vmem:[%s636 + $0x10] sm:$0xff] %v1371
        %1636 = vst [vmem:[%s643] sm:$0xff] %v1628
        %1637 = vst [vmem:[%s643 + $0x8] sm:$0xff] %v1629
        %1638 = vst [vmem:[%s643 + $0x10] sm:$0xff] %v1630
        %1639 = vst [vmem:[%s643 + $0x18] sm:$0xff] %v1631
        %1640 = vst [vmem:[%s643 + $0x20] sm:$0xff] %v1632
        %s1641 = sand.u32 %s284, 1
        %s1642 = scalar_lea.sflag [#allocation6], %s1641
        %s1643 = sand.u32 %s284, 1
        %s1644 = smul.addr %s1643, 24
        %s1645 = scalar_lea.vmem [#allocation16], %s1644
        %s1646 = sand.u32 %s310, 1
        %s1647 = scalar_lea.sflag [#allocation18], %s1646
        %s1648 = sand.u32 %s310, 1
        %s1649 = smul.addr %s1648, 40
        %s1650 = scalar_lea.vmem [#allocation17], %s1649
        // Predicated region
        $region85: #{tpu_custom_call.1} parent=51 // pred_check
          %p1651 = pneg %p294
        $region86: #{tpu_custom_call.1} parent=51 // pred_check_branch
          %1653 = sbr.rel (%p1651) target = $region88
        $region87: #{tpu_custom_call.1} parent=51 // pred_region
          %1655 = vsyncadd %s1642, 0
          %s1656 = smul.addr %s52, 3
          %s1657 = smul.addr %s1656, 8
          %s1658 = scalar_lea.hbm %s9, %s1657
          %s1659 = sshll.u32 %s1645, 4
          %s1660 = int_to_ptr.vmem [resolvable:$true] %s1659
          %s1661 = sshll.u32 %s1658, 4
          %s1662 = int_to_ptr.hbm [resolvable:$true] %s1661
          %1667 = dma.vmem_to_hbm [thread:$0]  %s1660, 384, %s1662, %s1642, 128, 128, 8
        $region88: #{tpu_custom_call.1} parent=51 // pred_fallthru
          _
        // Predicated region
        $region89: #{tpu_custom_call.1} parent=51 // pred_check
          %p1668 = pneg %p320
        $region90: #{tpu_custom_call.1} parent=51 // pred_check_branch
          %1670 = sbr.rel (%p1668) target = $region92
        $region91: #{tpu_custom_call.1} parent=51 // pred_region
          %1672 = vsyncadd %s1647, 0
          %s1673 = smul.addr %s52, 5
          %s1674 = smul.addr %s1673, 8
          %s1675 = scalar_lea.hbm %s10, %s1674
          %s1676 = sshll.u32 %s1650, 4
          %s1677 = int_to_ptr.vmem [resolvable:$true] %s1676
          %s1678 = sshll.u32 %s1675, 4
          %s1679 = int_to_ptr.hbm [resolvable:$true] %s1678
          %1684 = dma.vmem_to_hbm [thread:$0]  %s1677, 640, %s1679, %s1647, 128, 128, 8
        $region92: #{tpu_custom_call.1} parent=51 // pred_fallthru
          _
      $region52: #{tpu_custom_call.1} parent=5 // pred_fallthru
        _
      %p1685 = scmp.le.s32.totalorder 2, %s43
      // Predicated region
      $region93: #{tpu_custom_call.1} parent=5 // pred_check
        %p1686 = pneg %p1685
      $region94: #{tpu_custom_call.1} parent=5 // pred_check_branch
        %1688 = sbr.rel (%p1686) target = $region96
      $region95: #{tpu_custom_call.1} parent=5 // pred_region
        %s1689 = ssub.s32 %s43, 2
        // Predicated region
        $region97: #{tpu_custom_call.1} parent=95 // pred_check
          %p1690 = pneg %p300
        $region98: #{tpu_custom_call.1} parent=95 // pred_check_branch
          %1692 = sbr.rel (%p1690) target = $region100
        $region99: #{tpu_custom_call.1} parent=95 // pred_region
          %s1693 = sand.u32 %s285, 1
          %s1694 = scalar_lea.sflag [#allocation6], %s1693
          %s1695 = sand.u32 %s285, 1
          %s1696 = smul.addr %s1695, 24
          %s1697 = scalar_lea.vmem [#allocation16], %s1696
          %1699 = dma.done %s1694, 384
        $region100: #{tpu_custom_call.1} parent=95 // pred_fallthru
          _
        // Predicated region
        $region101: #{tpu_custom_call.1} parent=95 // pred_check
          %p1700 = pneg %p326
        $region102: #{tpu_custom_call.1} parent=95 // pred_check_branch
          %1702 = sbr.rel (%p1700) target = $region104
        $region103: #{tpu_custom_call.1} parent=95 // pred_region
          %s1703 = sand.u32 %s311, 1
          %s1704 = scalar_lea.sflag [#allocation18], %s1703
          %s1705 = sand.u32 %s311, 1
          %s1706 = smul.addr %s1705, 40
          %s1707 = scalar_lea.vmem [#allocation17], %s1706
          %1709 = dma.done %s1704, 640
        $region104: #{tpu_custom_call.1} parent=95 // pred_fallthru
          _
      $region96: #{tpu_custom_call.1} parent=5 // pred_fallthru
        _
    $region6: #{tpu_custom_call.1} parent=1 // loop_footer
      %s47 = sadd.s32 1, %s43
    $region7: #{tpu_custom_call.1} parent=1 // loop_footer_branch
      %42 = sbr.rel target = $region3
    $region8: #{tpu_custom_call.1} parent=1 // loop_exit
      _
    %1710 = vsyncpa [#allocation5], 1
    %s1711 = scalar_lea.sflag [#allocation5], 1
    %1712 = vsyncpa %s1711, 1
    %1713 = vsyncpa [#allocation8], 1
    %s1714 = scalar_lea.sflag [#allocation8], 1
    %1715 = vsyncpa %s1714, 1
    %1716 = vsyncpa [#allocation11], 1
    %s1717 = scalar_lea.sflag [#allocation11], 1
    %1718 = vsyncpa %s1717, 1
    %1719 = vsyncpa [#allocation14], 1
    %s1720 = scalar_lea.sflag [#allocation14], 1
    %1721 = vsyncpa %s1720, 1
    %1722 = vsyncpa [#allocation6], 1
    %s1723 = scalar_lea.sflag [#allocation6], 1
    %1724 = vsyncpa %s1723, 1
    %1725 = vsyncpa [#allocation18], 1
    %s1726 = scalar_lea.sflag [#allocation18], 1
    %1727 = vsyncpa %s1726, 1

</llo_original>
